<compile_context>
chip_gen: v7x
topology: tpu7x:2x2x1
jax: 0.10.0
libtpu: 0.0.40
codegen_flags: <defaults>
</compile_context>

<pallas_src>
import functools
import re

import jax
import jax.numpy as jnp
from jax.experimental import pallas as pl
from jax.experimental.pallas import tpu as pltpu

LN_EPS = 1e-5  # torch.nn.LayerNorm default


# --------------------------------------------------------------------------
# Kernel
# --------------------------------------------------------------------------
def _mlp_proj_kernel(x_ref, w1_ref, b1_ref, w2_ref, b2_ref, g_ref, beta_ref,
                     o_ref, *, approx_gelu):
    cdt = w1_ref.dtype  # MXU operand dtype (bf16)

    # ---- Linear 1: (TB, Din) @ (Din, Din) -> f32 acc, + f32 bias ----------
    # x arrives f32; cast to bf16 here (in-kernel, hidden under the MXU)
    # instead of a separate HBM-round-trip convert in the wrapper.
    x = x_ref[...].astype(cdt)
    h = jnp.dot(x, w1_ref[...], preferred_element_type=jnp.float32)
    h = h + b1_ref[...]

    # ---- GELU --------------------------------------------------------------
    if approx_gelu:
        # tanh approximation: transcendental goes to the EUP slot (v5e relief).
        c = jnp.float32(0.7978845608028654)          # sqrt(2/pi)
        h = 0.5 * h * (1.0 + jnp.tanh(c * (h + jnp.float32(0.044715) * h * h * h)))
    else:
        # exact erf-based GELU -- matches torch.nn.GELU() default.
        h = 0.5 * h * (1.0 + jax.lax.erf(h * jnp.float32(0.7071067811865476)))

    # ---- Linear 2: (TB, Din) @ (Din, Dout) -> f32 acc, + f32 bias ----------
    y = jnp.dot(h.astype(cdt), w2_ref[...], preferred_element_type=jnp.float32)
    y = y + b2_ref[...]

    # ---- LayerNorm over last dim (f32, biased variance like PyTorch) -------
    mean = jnp.mean(y, axis=-1, keepdims=True)
    centered = y - mean
    var = jnp.mean(centered * centered, axis=-1, keepdims=True)
    y_norm = centered * jax.lax.rsqrt(var + jnp.float32(LN_EPS))
    o_ref[...] = (y_norm * g_ref[...] + beta_ref[...]).astype(o_ref.dtype)


# --------------------------------------------------------------------------
# Helpers
# --------------------------------------------------------------------------
def _round_up(x, m):
    return ((x + m - 1) // m) * m


def _tpu_generation():
    try:
        kind = jax.devices()[0].device_kind.lower()
        m = re.search(r"(\d+)", kind)
        return int(m.group(1)) if m else 6
    except Exception:  # CPU / interpret fallback
        return 6


def _auto_block_b(batch, gen):
    # v6e/v7x MXU is 256-wide, v5e-and-older is 128-wide.
    base = 128 if gen <= 5 else 256
    block_b = min(base, _round_up(max(batch, 1), 8))
    # v7x: 2 TensorCores/chip share the ("parallel",) batch grid -- guarantee
    # >= 2 grid steps once there is enough work for both cores.  For tiny B
    # (weight-DMA-bound) keep a single step.
    if gen >= 7 and batch > 2 * 128:
        block_b = min(block_b, _round_up((batch + 1) // 2, 8))
    return block_b


def _vmem_limit_bytes(block_b, d_in, d_out, w_bytes, x_bytes, out_bytes, gen):
    weights = (d_in * d_in + d_in * d_out) * w_bytes   # resident, single-buffered
    small = 2 * (d_in + 3 * d_out) * 4                 # b1, b2, gamma, beta
    x_tiles = 2 * block_b * d_in * x_bytes             # double-buffered input tile
    o_tiles = 2 * block_b * d_out * out_bytes          # double-buffered output tile
    work = block_b * (3 * d_in + 2 * d_out) * 4        # bf16 x copy + h/y f32 working set
    need = weights + small + x_tiles + o_tiles + work
    phys = (64 << 20) if gen >= 7 else (128 << 20)     # per-TC physical VMEM
    limit = need * 3 // 2 + (2 << 20)                  # +50% + 2 MiB headroom
    return int(min(max(limit, 20 << 20), (phys * 3) // 4))


# --------------------------------------------------------------------------
# One-time parameter preparation (hoists weight casts off the hot path)
# --------------------------------------------------------------------------
def prepare_mlp_proj_params(w1, b1, w2, b2, ln_gamma, ln_beta,
                            *, compute_dtype=jnp.bfloat16):
    """Cast weights to the MXU dtype and biases/LN params to f32 row vectors.

    Weights are stored (in_features, out_features) -- transposed vs PyTorch's
    nn.Linear (out, in) -- so the kernel computes x @ W + b.
    """
    d_in = w1.shape[0]
    d_out = w2.shape[1]
    return {
        "w1": jnp.asarray(w1, compute_dtype),
        "b1": jnp.reshape(jnp.asarray(b1, jnp.float32), (1, d_in)),
        "w2": jnp.asarray(w2, compute_dtype),
        "b2": jnp.reshape(jnp.asarray(b2, jnp.float32), (1, d_out)),
        "gamma": jnp.reshape(jnp.asarray(ln_gamma, jnp.float32), (1, d_out)),
        "beta": jnp.reshape(jnp.asarray(ln_beta, jnp.float32), (1, d_out)),
    }


# --------------------------------------------------------------------------
# pallas_call wrapper
# --------------------------------------------------------------------------
@functools.partial(
    jax.jit,
    static_argnames=("block_b", "out_dtype", "approx_gelu", "vmem_limit"))
def _mlp_proj_call(x, w1, b1, w2, b2, g, beta, *, block_b, out_dtype,
                   approx_gelu, vmem_limit):
    B, d_in = x.shape
    d_out = w2.shape[1]
    grid = (pl.cdiv(B, block_b),)

    # Grid-invariant operands: constant index_map (DMA'd once for the whole
    # grid) and single-buffered -- double-buffering unchanging data wastes VMEM.
    def const_spec(shape):
        return pl.BlockSpec(shape, lambda i: (0, 0),
                            pipeline_mode=pl.Buffered(1))

    kernel = functools.partial(_mlp_proj_kernel, approx_gelu=approx_gelu)

    return pl.pallas_call(
        kernel,
        out_shape=jax.ShapeDtypeStruct((B, d_out), out_dtype),
        grid_spec=pltpu.PrefetchScalarGridSpec(
            num_scalar_prefetch=0,
            grid=grid,
            in_specs=[
                pl.BlockSpec((block_b, d_in), lambda i: (i, 0)),  # x tile (f32)
                const_spec((d_in, d_in)),                          # W1 (full)
                const_spec((1, d_in)),                             # b1
                const_spec((d_in, d_out)),                         # W2 (full)
                const_spec((1, d_out)),                            # b2
                const_spec((1, d_out)),                            # ln gamma
                const_spec((1, d_out)),                            # ln beta
            ],
            out_specs=pl.BlockSpec((block_b, d_out), lambda i: (i, 0)),
        ),
        compiler_params=pltpu.CompilerParams(
            dimension_semantics=("parallel",),
            vmem_limit_bytes=vmem_limit,
        ),
    )(x, w1, b1, w2, b2, g, beta)


def mlp_proj_model(image_embeds, params, *, block_b=None, out_dtype=None,
                   approx_gelu=False):
    """Fused Linear -> GELU -> Linear -> LayerNorm.

    image_embeds : (B, clip_embeddings_dim) float array (cast to bf16 in-kernel
                   for the MXU; both matmuls accumulate in f32).
    params       : dict from prepare_mlp_proj_params().
    out_dtype    : default = image_embeds.dtype (f32, matching the PyTorch
                   module); pass jnp.bfloat16 to halve output HBM traffic.
    Returns (B, cross_attention_dim).

    NOTE: arbitrary B works via Pallas partial last-block handling -- padded
    rows are garbage but every op is row-independent and their stores are
    masked.  Keep that invariant if editing the kernel.
    """
    B, d_in = image_embeds.shape
    d_out = params["w2"].shape[1]
    gen = _tpu_generation()
    if block_b is None:
        block_b = _auto_block_b(B, gen)
    block_b = min(_round_up(int(block_b), 8), _round_up(max(B, 1), 8))
    if out_dtype is None:
        out_dtype = image_embeds.dtype
    out_dtype = jnp.dtype(out_dtype)
    vmem_limit = _vmem_limit_bytes(
        block_b, d_in, d_out,
        jnp.dtype(params["w1"].dtype).itemsize,
        jnp.dtype(image_embeds.dtype).itemsize,
        out_dtype.itemsize, gen)
    return _mlp_proj_call(
        image_embeds, params["w1"], params["b1"], params["w2"], params["b2"],
        params["gamma"], params["beta"],
        block_b=int(block_b), out_dtype=out_dtype,
        approx_gelu=bool(approx_gelu), vmem_limit=int(vmem_limit))


# --------------------------------------------------------------------------
# References
# --------------------------------------------------------------------------
def _reference_f32(x, w1, b1, w2, b2, g, beta):
    """Pure-f32 module semantics (matches the PyTorch module)."""
    h = x @ w1 + b1
    h = jax.nn.gelu(h, approximate=False)
    y = h @ w2 + b2
    mean = jnp.mean(y, axis=-1, keepdims=True)
    var = jnp.mean((y - mean) ** 2, axis=-1, keepdims=True)
    return (y - mean) / jnp.sqrt(var + LN_EPS) * g + beta


def _reference_kernel_numerics(x, w1, b1, w2, b2, g, beta):
    """Mirrors the kernel's bf16-input / f32-accumulate numerics."""
    bf = lambda a: a.astype(jnp.bfloat16).astype(jnp.float32)
    h = bf(x) @ bf(w1) + b1
    h = 0.5 * h * (1.0 + jax.lax.erf(h * 0.7071067811865476))
    y = bf(h) @ bf(w2) + b2
    mean = jnp.mean(y, axis=-1, keepdims=True)
    var = jnp.mean((y - mean) ** 2, axis=-1, keepdims=True)
    return (y - mean) * jax.lax.rsqrt(var + LN_EPS) * g + beta


# --------------------------------------------------------------------------
# Self-test
# --------------------------------------------------------------------------
if __name__ == "__main__":
    # Small, TPU-tile-friendly stand-ins for the real dims
    # (checkpoint: clip_embeddings_dim=1024, cross_attention_dim=1024).
    B = 200                      # deliberately NOT a multiple of any tile size
    clip_embeddings_dim = 256
    cross_attention_dim = 128

    key = jax.random.PRNGKey(0)
    kx, kw1, kb1, kw2, kb2 = jax.random.split(key, 5)

    image_embeds = jax.random.normal(kx, (B, clip_embeddings_dim),
                                     dtype=jnp.float32)

    # Deterministic nn.Linear-like synthetic parameters, stored as (in, out).
    w1 = jax.random.normal(kw1, (clip_embeddings_dim, clip_embeddings_dim),
                           dtype=jnp.float32) * (clip_embeddings_dim ** -0.5)
    b1 = jax.random.normal(kb1, (clip_embeddings_dim,), dtype=jnp.float32) * 0.01
    w2 = jax.random.normal(kw2, (clip_embeddings_dim, cross_attention_dim),
                           dtype=jnp.float32) * (clip_embeddings_dim ** -0.5)
    b2 = jax.random.normal(kb2, (cross_attention_dim,), dtype=jnp.float32) * 0.01
    ln_gamma = jnp.ones((cross_attention_dim,), dtype=jnp.float32)   # LN init
    ln_beta = jnp.zeros((cross_attention_dim,), dtype=jnp.float32)

    # One-time parameter prep (bf16 weights) -- off the per-call hot path.
    params = prepare_mlp_proj_params(w1, b1, w2, b2, ln_gamma, ln_beta)

    # 1) Auto block_b (chip-dependent), f32 output.
    out = mlp_proj_model(image_embeds, params)
    out = jax.block_until_ready(out)
    assert out.shape == (B, cross_attention_dim)
    assert out.dtype == jnp.float32
    assert bool(jnp.all(jnp.isfinite(out)))

    # Tight check vs a reference mirroring the kernel's bf16/f32 numerics.
    ref = _reference_kernel_numerics(
        image_embeds, w1, b1.reshape(1, -1), w2, b2.reshape(1, -1),
        ln_gamma.reshape(1, -1), ln_beta.reshape(1, -1))
    assert jnp.allclose(out, ref, atol=3e-3, rtol=3e-3), \
        float(jnp.max(jnp.abs(out - ref)))

    # Sanity vs pure-f32 module semantics (looser: bf16 weight quantisation).
    ref_f32 = _reference_f32(
        image_embeds, w1, b1.reshape(1, -1), w2, b2.reshape(1, -1),
        ln_gamma.reshape(1, -1), ln_beta.reshape(1, -1))
    assert float(jnp.max(jnp.abs(out - ref_f32))) < 0.1

    # 2) Explicit small block_b -> multi-step grid with a partial last block.
    out_multi = jax.block_until_ready(
        mlp_proj_model(image_embeds, params, block_b=64))
    assert jnp.allclose(out, out_multi, atol=1e-6, rtol=1e-6)

    # 3) bf16 output path (halves output HBM traffic).
    out_bf16 = jax.block_until_ready(
        mlp_proj_model(image_embeds, params, out_dtype=jnp.bfloat16))
    assert out_bf16.dtype == jnp.bfloat16
    assert float(jnp.max(jnp.abs(out_bf16.astype(jnp.float32) - out))) < 0.05

    print("KERNEL_OK")
</pallas_src>

<mosaic_0001>
module attributes {stable_mosaic.version = 11 : i64} {
  func.func @_mlp_proj_kernel(%arg0: i32, %arg1: memref<200x256xf32, #tpu.memory_space<vmem>>, %arg2: memref<256x256xbf16, #tpu.memory_space<vmem>>, %arg3: memref<1x256xf32, #tpu.memory_space<vmem>>, %arg4: memref<256x128xbf16, #tpu.memory_space<vmem>>, %arg5: memref<1x128xf32, #tpu.memory_space<vmem>>, %arg6: memref<1x128xf32, #tpu.memory_space<vmem>>, %arg7: memref<1x128xf32, #tpu.memory_space<vmem>>, %arg8: memref<200x128xf32, #tpu.memory_space<vmem>>) attributes {dimension_semantics = [#tpu.dimension_semantics<parallel>], iteration_bounds = array<i64: 1>, scalar_prefetch = 0 : i64, scratch_operands = 0 : i64, tpu.core_type = #tpu.core_type<tc>, window_params = [{transform_indices = @transform_0, window_bounds = array<i64: 200, 256>}, {pipeline_mode = #tpu.pipeline_mode<synchronous>, transform_indices = @transform_1, window_bounds = array<i64: 256, 256>}, {pipeline_mode = #tpu.pipeline_mode<synchronous>, transform_indices = @transform_2, window_bounds = array<i64: 1, 256>}, {pipeline_mode = #tpu.pipeline_mode<synchronous>, transform_indices = @transform_3, window_bounds = array<i64: 256, 128>}, {pipeline_mode = #tpu.pipeline_mode<synchronous>, transform_indices = @transform_4, window_bounds = array<i64: 1, 128>}, {pipeline_mode = #tpu.pipeline_mode<synchronous>, transform_indices = @transform_5, window_bounds = array<i64: 1, 128>}, {pipeline_mode = #tpu.pipeline_mode<synchronous>, transform_indices = @transform_6, window_bounds = array<i64: 1, 128>}, {transform_indices = @transform_7, window_bounds = array<i64: 200, 128>}]} {
    %c0 = arith.constant 0 : index
    %c0_0 = arith.constant 0 : index
    %0 = vector.load %arg1[%c0, %c0_0] : memref<200x256xf32, #tpu.memory_space<vmem>>, vector<200x256xf32>
    %1 = arith.truncf %0 : vector<200x256xf32> to vector<200x256xbf16>
    %c0_1 = arith.constant 0 : index
    %c0_2 = arith.constant 0 : index
    %2 = vector.load %arg2[%c0_1, %c0_2] : memref<256x256xbf16, #tpu.memory_space<vmem>>, vector<256x256xbf16>
    %cst = arith.constant dense<0.000000e+00> : vector<200x256xf32>
    %3 = tpu.matmul %1, %2, %cst {dimension_numbers = #tpu.dot_dimension_numbers<[1], [0], [0], [1], [0, 0, 1, 1], [], []>} : vector<200x256xbf16>, vector<256x256xbf16>, vector<200x256xf32> -> vector<200x256xf32>
    %c0_3 = arith.constant 0 : index
    %c0_4 = arith.constant 0 : index
    %4 = vector.load %arg3[%c0_3, %c0_4] : memref<1x256xf32, #tpu.memory_space<vmem>>, vector<1x256xf32>
    %5 = vector.broadcast %4 : vector<1x256xf32> to vector<200x256xf32>
    %6 = arith.addf %3, %5 : vector<200x256xf32>
    %cst_5 = arith.constant 5.000000e-01 : f32
    %7 = vector.broadcast %cst_5 : f32 to vector<200x256xf32>
    %8 = arith.mulf %7, %6 : vector<200x256xf32>
    %cst_6 = arith.constant 0.707106769 : f32
    %9 = vector.broadcast %cst_6 : f32 to vector<200x256xf32>
    %10 = arith.mulf %6, %9 : vector<200x256xf32>
    %11 = math.erf %10 : vector<200x256xf32>
    %cst_7 = arith.constant 1.000000e+00 : f32
    %12 = vector.broadcast %cst_7 : f32 to vector<200x256xf32>
    %13 = arith.addf %12, %11 : vector<200x256xf32>
    %14 = arith.mulf %8, %13 : vector<200x256xf32>
    %15 = arith.truncf %14 : vector<200x256xf32> to vector<200x256xbf16>
    %c0_8 = arith.constant 0 : index
    %c0_9 = arith.constant 0 : index
    %16 = vector.load %arg4[%c0_8, %c0_9] : memref<256x128xbf16, #tpu.memory_space<vmem>>, vector<256x128xbf16>
    %cst_10 = arith.constant dense<0.000000e+00> : vector<200x128xf32>
    %17 = tpu.matmul %15, %16, %cst_10 {dimension_numbers = #tpu.dot_dimension_numbers<[1], [0], [0], [1], [0, 0, 1, 1], [], []>} : vector<200x256xbf16>, vector<256x128xbf16>, vector<200x128xf32> -> vector<200x128xf32>
    %c0_11 = arith.constant 0 : index
    %c0_12 = arith.constant 0 : index
    %18 = vector.load %arg5[%c0_11, %c0_12] : memref<1x128xf32, #tpu.memory_space<vmem>>, vector<1x128xf32>
    %19 = vector.broadcast %18 : vector<1x128xf32> to vector<200x128xf32>
    %20 = arith.addf %17, %19 : vector<200x128xf32>
    %cst_13 = arith.constant dense<0.000000e+00> : vector<200xf32>
    %21 = vector.multi_reduction <add>, %20, %cst_13 [1] : vector<200x128xf32> to vector<200xf32>
    %22 = vector.shape_cast %21 : vector<200xf32> to vector<200x1xf32>
    %cst_14 = arith.constant 1.280000e+02 : f32
    %23 = vector.broadcast %cst_14 : f32 to vector<200x1xf32>
    %24 = arith.divf %22, %23 : vector<200x1xf32>
    %25 = vector.broadcast %24 : vector<200x1xf32> to vector<200x128xf32>
    %26 = arith.subf %20, %25 : vector<200x128xf32>
    %27 = arith.mulf %26, %26 : vector<200x128xf32>
    %cst_15 = arith.constant dense<0.000000e+00> : vector<200xf32>
    %28 = vector.multi_reduction <add>, %27, %cst_15 [1] : vector<200x128xf32> to vector<200xf32>
    %29 = vector.shape_cast %28 : vector<200xf32> to vector<200x1xf32>
    %cst_16 = arith.constant 1.280000e+02 : f32
    %30 = vector.broadcast %cst_16 : f32 to vector<200x1xf32>
    %31 = arith.divf %29, %30 : vector<200x1xf32>
    %cst_17 = arith.constant 9.99999974E-6 : f32
    %32 = vector.broadcast %cst_17 : f32 to vector<200x1xf32>
    %33 = arith.addf %31, %32 : vector<200x1xf32>
    %34 = math.rsqrt %33 : vector<200x1xf32>
    %35 = vector.broadcast %34 : vector<200x1xf32> to vector<200x128xf32>
    %36 = arith.mulf %26, %35 : vector<200x128xf32>
    %c0_18 = arith.constant 0 : index
    %c0_19 = arith.constant 0 : index
    %37 = vector.load %arg6[%c0_18, %c0_19] : memref<1x128xf32, #tpu.memory_space<vmem>>, vector<1x128xf32>
    %38 = vector.broadcast %37 : vector<1x128xf32> to vector<200x128xf32>
    %39 = arith.mulf %36, %38 : vector<200x128xf32>
    %c0_20 = arith.constant 0 : index
    %c0_21 = arith.constant 0 : index
    %40 = vector.load %arg7[%c0_20, %c0_21] : memref<1x128xf32, #tpu.memory_space<vmem>>, vector<1x128xf32>
    %41 = vector.broadcast %40 : vector<1x128xf32> to vector<200x128xf32>
    %42 = arith.addf %39, %41 : vector<200x128xf32>
    %c0_22 = arith.constant 0 : index
    %c0_23 = arith.constant 0 : index
    %43 = vector.load %arg8[%c0_22, %c0_23] : memref<200x128xf32, #tpu.memory_space<vmem>>, vector<200x128xf32>
    tpu.vector_store %arg8[%c0_22, %c0_23], %42 {strides = array<i32>} : memref<200x128xf32, #tpu.memory_space<vmem>>, vector<200x128xf32>,
    return
  }
  func.func @transform_0(%arg0: i32) -> (i32, i32) {
    %c0_i32 = arith.constant 0 : i32
    %c0_i32_0 = arith.constant 0 : i32
    return %arg0, %c0_i32 : i32, i32
  }
  func.func @transform_1(%arg0: i32) -> (i32, i32) {
    %c0_i32 = arith.constant 0 : i32
    %c0_i32_0 = arith.constant 0 : i32
    %c0_i32_1 = arith.constant 0 : i32
    return %c0_i32, %c0_i32_0 : i32, i32
  }
  func.func @transform_2(%arg0: i32) -> (i32, i32) {
    %c0_i32 = arith.constant 0 : i32
    %c0_i32_0 = arith.constant 0 : i32
    %c0_i32_1 = arith.constant 0 : i32
    return %c0_i32, %c0_i32_0 : i32, i32
  }
  func.func @transform_3(%arg0: i32) -> (i32, i32) {
    %c0_i32 = arith.constant 0 : i32
    %c0_i32_0 = arith.constant 0 : i32
    %c0_i32_1 = arith.constant 0 : i32
    return %c0_i32, %c0_i32_0 : i32, i32
  }
  func.func @transform_4(%arg0: i32) -> (i32, i32) {
    %c0_i32 = arith.constant 0 : i32
    %c0_i32_0 = arith.constant 0 : i32
    %c0_i32_1 = arith.constant 0 : i32
    return %c0_i32, %c0_i32_0 : i32, i32
  }
  func.func @transform_5(%arg0: i32) -> (i32, i32) {
    %c0_i32 = arith.constant 0 : i32
    %c0_i32_0 = arith.constant 0 : i32
    %c0_i32_1 = arith.constant 0 : i32
    return %c0_i32, %c0_i32_0 : i32, i32
  }
  func.func @transform_6(%arg0: i32) -> (i32, i32) {
    %c0_i32 = arith.constant 0 : i32
    %c0_i32_0 = arith.constant 0 : i32
    %c0_i32_1 = arith.constant 0 : i32
    return %c0_i32, %c0_i32_0 : i32, i32
  }
  func.func @transform_7(%arg0: i32) -> (i32, i32) {
    %c0_i32 = arith.constant 0 : i32
    %c0_i32_0 = arith.constant 0 : i32
    return %arg0, %c0_i32 : i32, i32
  }
}

</mosaic_0001>

<llo_original>
// kernel: _mlp_proj_call.1
$region0: #{_mlp_proj_call.1}
  #allocation0 [shape = 'u32[]', space=smem, size = 0x4, offset = 0x4, fixed_abs, tag = 'smem constant byte address 0x4 - core index']
  #allocation1 [shape = 'u32[144,128]{1,0:T(1,128)}', space=vmem, size = 0x12000, scoped, tag = 'internal scratch']
  %s0 = inlined_call_operand.hbm [shape: f32[200,256], index: 0, kind: input, shape index: {}]
  %s1 = inlined_call_operand.hbm [shape: bf16[256,256], index: 1, kind: input, shape index: {}]
  %s2 = inlined_call_operand.vmem [shape: f32[1,256], index: 2, kind: input, shape index: {}]
  %s3 = inlined_call_operand.hbm [shape: bf16[256,128], index: 3, kind: input, shape index: {}]
  %s4 = inlined_call_operand.vmem [shape: f32[1,128], index: 4, kind: input, shape index: {}]
  %s5 = inlined_call_operand.vmem [shape: f32[1,128], index: 5, kind: input, shape index: {}]
  %s6 = inlined_call_operand.vmem [shape: f32[1,128], index: 6, kind: input, shape index: {}]
  %s7 = inlined_call_operand.hbm [shape: f32[200,128], index: 7, kind: output, shape index: {}]
  %s8 = sld [smem:[#allocation0]]
  $region50: #{_mlp_proj_call.1} parent=0
    _
  %s10 = ssub.s32 1, %s8
  %s11 = scalar_select 0, %s10, %s8
  $region1: #{_mlp_proj_call.1} parent=0
    #allocation2 [shape = 'u8[204800]{0}', space=vmem, size = 0x32000, scoped, tag = 'input window, operand 0, single buffered']
    #allocation3 [shape = 's32[1]{0}', space=sflag, size = 0x4, scoped, tag = 'scoped memory for _mlp_proj_call.1']
    #allocation4 [shape = 's32[1]{0}', space=sflag, size = 0x4, scoped, tag = 'scoped memory for _mlp_proj_call.1']
    #allocation5 [shape = 'u8[131072]{0}', space=vmem, size = 0x20000, scoped, tag = 'input window, operand 1, single buffered']
    #allocation6 [shape = 's32[1]{0}', space=sflag, size = 0x4, scoped, tag = 'scoped memory for _mlp_proj_call.1']
    #allocation7 [shape = 'u8[65536]{0}', space=vmem, size = 0x10000, scoped, tag = 'input window, operand 3, single buffered']
    #allocation8 [shape = 'u8[102400]{0}', space=vmem, size = 0x19000, scoped, tag = 'output window, operand 0, single buffered']
    %12 = vsyncpa [#allocation3], 0
    %13 = vsyncpa [#allocation6], 0
    %14 = vsyncpa [#allocation4], 0
    // Predicated region
    $region2: #{_mlp_proj_call.1} parent=1 // pred_check
      _
    $region3: #{_mlp_proj_call.1} parent=1 // pred_check_branch
      %16 = sbr.rel (0) target = $region5
    $region4: #{_mlp_proj_call.1} parent=1 // pred_region
      %s18 = ssub.s32 6400, 6400
      %19 = vsyncadd [#allocation3], %s18
      %s20 = sshll.u32 [#allocation2], 4
      %s21 = int_to_ptr.vmem [resolvable:$true] %s20
      %26 = dma.hbm_to_vmem [thread:$0]  %s0, 6400, %s21, [#allocation3], 256, 256, 16
    $region5: #{_mlp_proj_call.1} parent=1 // pred_fallthru
      _
    // Predicated region
    $region6: #{_mlp_proj_call.1} parent=1 // pred_check
      _
    $region7: #{_mlp_proj_call.1} parent=1 // pred_check_branch
      %28 = sbr.rel (0) target = $region9
    $region8: #{_mlp_proj_call.1} parent=1 // pred_region
      %s30 = ssub.s32 4096, 4096
      %31 = vsyncadd [#allocation6], %s30
      %s32 = sshll.u32 [#allocation5], 4
      %s33 = int_to_ptr.vmem [resolvable:$true] %s32
      %38 = dma.hbm_to_vmem [thread:$0]  %s1, 4096, %s33, [#allocation6], 128, 128, 8
    $region9: #{_mlp_proj_call.1} parent=1 // pred_fallthru
      _
    // Predicated region
    $region10: #{_mlp_proj_call.1} parent=1 // pred_check
      _
    $region11: #{_mlp_proj_call.1} parent=1 // pred_check_branch
      %40 = sbr.rel (0) target = $region13
    $region12: #{_mlp_proj_call.1} parent=1 // pred_region
      _
    $region13: #{_mlp_proj_call.1} parent=1 // pred_fallthru
      _
    // Predicated region
    $region14: #{_mlp_proj_call.1} parent=1 // pred_check
      _
    $region15: #{_mlp_proj_call.1} parent=1 // pred_check_branch
      %42 = sbr.rel (0) target = $region17
    $region16: #{_mlp_proj_call.1} parent=1 // pred_region
      %s44 = ssub.s32 2048, 2048
      %45 = vsyncadd [#allocation6], %s44
      %s46 = sshll.u32 [#allocation7], 4
      %s47 = int_to_ptr.vmem [resolvable:$true] %s46
      %52 = dma.hbm_to_vmem [thread:$0]  %s3, 2048, %s47, [#allocation6], 64, 64, 4
    $region17: #{_mlp_proj_call.1} parent=1 // pred_fallthru
      _
    // Predicated region
    $region18: #{_mlp_proj_call.1} parent=1 // pred_check
      _
    $region19: #{_mlp_proj_call.1} parent=1 // pred_check_branch
      %54 = sbr.rel (0) target = $region21
    $region20: #{_mlp_proj_call.1} parent=1 // pred_region
      _
    $region21: #{_mlp_proj_call.1} parent=1 // pred_fallthru
      _
    // Predicated region
    $region22: #{_mlp_proj_call.1} parent=1 // pred_check
      _
    $region23: #{_mlp_proj_call.1} parent=1 // pred_check_branch
      %56 = sbr.rel (0) target = $region25
    $region24: #{_mlp_proj_call.1} parent=1 // pred_region
      _
    $region25: #{_mlp_proj_call.1} parent=1 // pred_fallthru
      _
    // Predicated region
    $region26: #{_mlp_proj_call.1} parent=1 // pred_check
      _
    $region27: #{_mlp_proj_call.1} parent=1 // pred_check_branch
      %58 = sbr.rel (0) target = $region29
    $region28: #{_mlp_proj_call.1} parent=1 // pred_region
      _
    $region29: #{_mlp_proj_call.1} parent=1 // pred_fallthru
      _
    // Predicated region
    $region30: #{_mlp_proj_call.1} parent=1 // pred_check
      _
    $region31: #{_mlp_proj_call.1} parent=1 // pred_check_branch
      %60 = sbr.rel (0) target = $region33
    $region32: #{_mlp_proj_call.1} parent=1 // pred_region
      %61 = dma.done [#allocation3], 6400
    $region33: #{_mlp_proj_call.1} parent=1 // pred_fallthru
      _
    // Predicated region
    $region34: #{_mlp_proj_call.1} parent=1 // pred_check
      _
    $region35: #{_mlp_proj_call.1} parent=1 // pred_check_branch
      %63 = sbr.rel (0) target = $region37
    $region36: #{_mlp_proj_call.1} parent=1 // pred_region
      %64 = dma.done [#allocation6], 4096
    $region37: #{_mlp_proj_call.1} parent=1 // pred_fallthru
      _
    // Predicated region
    $region38: #{_mlp_proj_call.1} parent=1 // pred_check
      _
    $region39: #{_mlp_proj_call.1} parent=1 // pred_check_branch
      %66 = sbr.rel (0) target = $region41
    $region40: #{_mlp_proj_call.1} parent=1 // pred_region
      %67 = dma.done [#allocation6], 2048
    $region41: #{_mlp_proj_call.1} parent=1 // pred_fallthru
      _
    %v69 = vld [vmem:[#allocation2] sm:$0xff]
    %v70 = vld [vmem:[#allocation2 + $0x8] sm:$0xff]
    %v71 = vld [vmem:[#allocation2 + $0x10] sm:$0xff]
    %v72 = vld [vmem:[#allocation2 + $0x18] sm:$0xff]
    %v73 = vld [vmem:[#allocation2 + $0x20] sm:$0xff]
    %v74 = vld [vmem:[#allocation2 + $0x28] sm:$0xff]
    %v75 = vld [vmem:[#allocation2 + $0x30] sm:$0xff]
    %v76 = vld [vmem:[#allocation2 + $0x38] sm:$0xff]
    %v77 = vld [vmem:[#allocation2 + $0x40] sm:$0xff]
    %v78 = vld [vmem:[#allocation2 + $0x48] sm:$0xff]
    %v79 = vld [vmem:[#allocation2 + $0x50] sm:$0xff]
    %v80 = vld [vmem:[#allocation2 + $0x58] sm:$0xff]
    %v81 = vld [vmem:[#allocation2 + $0x60] sm:$0xff]
    %v82 = vld [vmem:[#allocation2 + $0x68] sm:$0xff]
    %v83 = vld [vmem:[#allocation2 + $0x70] sm:$0xff]
    %v84 = vld [vmem:[#allocation2 + $0x78] sm:$0xff]
    %v85 = vld [vmem:[#allocation2 + $0x80] sm:$0xff]
    %v86 = vld [vmem:[#allocation2 + $0x88] sm:$0xff]
    %v87 = vld [vmem:[#allocation2 + $0x90] sm:$0xff]
    %v88 = vld [vmem:[#allocation2 + $0x98] sm:$0xff]
    %v89 = vld [vmem:[#allocation2 + $0xa0] sm:$0xff]
    %v90 = vld [vmem:[#allocation2 + $0xa8] sm:$0xff]
    %v91 = vld [vmem:[#allocation2 + $0xb0] sm:$0xff]
    %v92 = vld [vmem:[#allocation2 + $0xb8] sm:$0xff]
    %v93 = vld [vmem:[#allocation2 + $0xc0] sm:$0xff]
    %v94 = vld [vmem:[#allocation2 + $0xc8] sm:$0xff]
    %v95 = vld [vmem:[#allocation2 + $0xd0] sm:$0xff]
    %v96 = vld [vmem:[#allocation2 + $0xd8] sm:$0xff]
    %v97 = vld [vmem:[#allocation2 + $0xe0] sm:$0xff]
    %v98 = vld [vmem:[#allocation2 + $0xe8] sm:$0xff]
    %v99 = vld [vmem:[#allocation2 + $0xf0] sm:$0xff]
    %v100 = vld [vmem:[#allocation2 + $0xf8] sm:$0xff]
    %v101 = vld [vmem:[#allocation2 + $0x100] sm:$0xff]
    %v102 = vld [vmem:[#allocation2 + $0x108] sm:$0xff]
    %v103 = vld [vmem:[#allocation2 + $0x110] sm:$0xff]
    %v104 = vld [vmem:[#allocation2 + $0x118] sm:$0xff]
    %v105 = vld [vmem:[#allocation2 + $0x120] sm:$0xff]
    %v106 = vld [vmem:[#allocation2 + $0x128] sm:$0xff]
    %v107 = vld [vmem:[#allocation2 + $0x130] sm:$0xff]
    %v108 = vld [vmem:[#allocation2 + $0x138] sm:$0xff]
    %v109 = vld [vmem:[#allocation2 + $0x140] sm:$0xff]
    %v110 = vld [vmem:[#allocation2 + $0x148] sm:$0xff]
    %v111 = vld [vmem:[#allocation2 + $0x150] sm:$0xff]
    %v112 = vld [vmem:[#allocation2 + $0x158] sm:$0xff]
    %v113 = vld [vmem:[#allocation2 + $0x160] sm:$0xff]
    %v114 = vld [vmem:[#allocation2 + $0x168] sm:$0xff]
    %v115 = vld [vmem:[#allocation2 + $0x170] sm:$0xff]
    %v116 = vld [vmem:[#allocation2 + $0x178] sm:$0xff]
    %v117 = vld [vmem:[#allocation2 + $0x180] sm:$0xff]
    %v118 = vld [vmem:[#allocation2 + $0x188] sm:$0xff]
    %v119 = vpack.c.bf16 %v71, %v69
    %v120 = vpack.c.bf16 %v72, %v70
    %v121 = vpack.c.bf16 %v75, %v73
    %v122 = vpack.c.bf16 %v76, %v74
    %v123 = vpack.c.bf16 %v79, %v77
    %v124 = vpack.c.bf16 %v80, %v78
    %v125 = vpack.c.bf16 %v83, %v81
    %v126 = vpack.c.bf16 %v84, %v82
    %v127 = vpack.c.bf16 %v87, %v85
    %v128 = vpack.c.bf16 %v88, %v86
    %v129 = vpack.c.bf16 %v91, %v89
    %v130 = vpack.c.bf16 %v92, %v90
    %v131 = vpack.c.bf16 %v95, %v93
    %v132 = vpack.c.bf16 %v96, %v94
    %v133 = vpack.c.bf16 %v99, %v97
    %v134 = vpack.c.bf16 %v100, %v98
    %v135 = vpack.c.bf16 %v103, %v101
    %v136 = vpack.c.bf16 %v104, %v102
    %v137 = vpack.c.bf16 %v107, %v105
    %v138 = vpack.c.bf16 %v108, %v106
    %v139 = vpack.c.bf16 %v111, %v109
    %v140 = vpack.c.bf16 %v112, %v110
    %v141 = vpack.c.bf16 %v115, %v113
    %v142 = vpack.c.bf16 %v116, %v114
    %v143 = vpack.c.bf16 %v117, %v117
    %v144 = vpack.c.bf16 %v118, %v118
    %v145 = vld [vmem:[#allocation5] sm:$0xff]
    %v146 = vld [vmem:[#allocation5 + $0x8] sm:$0xff]
    %v147 = vld [vmem:[#allocation5 + $0x10] sm:$0xff]
    %v148 = vld [vmem:[#allocation5 + $0x18] sm:$0xff]
    %v149 = vld [vmem:[#allocation5 + $0x20] sm:$0xff]
    %v150 = vld [vmem:[#allocation5 + $0x28] sm:$0xff]
    %v151 = vld [vmem:[#allocation5 + $0x30] sm:$0xff]
    %v152 = vld [vmem:[#allocation5 + $0x38] sm:$0xff]
    %v153 = vld [vmem:[#allocation5 + $0x40] sm:$0xff]
    %v154 = vld [vmem:[#allocation5 + $0x48] sm:$0xff]
    %v155 = vld [vmem:[#allocation5 + $0x50] sm:$0xff]
    %v156 = vld [vmem:[#allocation5 + $0x58] sm:$0xff]
    %v157 = vld [vmem:[#allocation5 + $0x60] sm:$0xff]
    %v158 = vld [vmem:[#allocation5 + $0x68] sm:$0xff]
    %v159 = vld [vmem:[#allocation5 + $0x70] sm:$0xff]
    %v160 = vld [vmem:[#allocation5 + $0x78] sm:$0xff]
    %v161 = vld [vmem:[#allocation5 + $0x80] sm:$0xff]
    %v162 = vld [vmem:[#allocation5 + $0x88] sm:$0xff]
    %v163 = vld [vmem:[#allocation5 + $0x90] sm:$0xff]
    %v164 = vld [vmem:[#allocation5 + $0x98] sm:$0xff]
    %v165 = vld [vmem:[#allocation5 + $0xa0] sm:$0xff]
    %v166 = vld [vmem:[#allocation5 + $0xa8] sm:$0xff]
    %v167 = vld [vmem:[#allocation5 + $0xb0] sm:$0xff]
    %v168 = vld [vmem:[#allocation5 + $0xb8] sm:$0xff]
    %v169 = vld [vmem:[#allocation5 + $0xc0] sm:$0xff]
    %v170 = vld [vmem:[#allocation5 + $0xc8] sm:$0xff]
    %v171 = vld [vmem:[#allocation5 + $0xd0] sm:$0xff]
    %v172 = vld [vmem:[#allocation5 + $0xd8] sm:$0xff]
    %v173 = vld [vmem:[#allocation5 + $0xe0] sm:$0xff]
    %v174 = vld [vmem:[#allocation5 + $0xe8] sm:$0xff]
    %v175 = vld [vmem:[#allocation5 + $0xf0] sm:$0xff]
    %v176 = vld [vmem:[#allocation5 + $0xf8] sm:$0xff]
    %v177 = vld [vmem:[%s2] sm:$0x3]
    %v179 = vlaneseq
    %v180 = vshrl.u32 %v179, 7
    %v181 = vsub.s32 0, %v180
    %v182 = vrot.slane %v177, %v181
    %v183 = vlaneseq
    %v184 = vshrl.u32 %v183, 7
    %v185 = vsub.s32 1, %v184
    %v186 = vrot.slane %v177, %v185
    %v221 = vunpack.c.l.b16 %v145
    %v222 = vunpack.c.h.b16 %v145
    %v223 = vunpack.c.l.b16 %v146
    %v224 = vunpack.c.h.b16 %v146
    %v225 = vunpack.c.l.b16 %v147
    %v226 = vunpack.c.h.b16 %v147
    %v227 = vunpack.c.l.b16 %v148
    %v228 = vunpack.c.h.b16 %v148
    %v229 = vunpack.c.l.b16 %v149
    %v230 = vunpack.c.h.b16 %v149
    %v231 = vunpack.c.l.b16 %v150
    %v232 = vunpack.c.h.b16 %v150
    %v233 = vunpack.c.l.b16 %v151
    %v234 = vunpack.c.h.b16 %v151
    %v235 = vunpack.c.l.b16 %v152
    %v236 = vunpack.c.h.b16 %v152
    %v237 = vunpack.c.l.b16 %v153
    %v238 = vunpack.c.h.b16 %v153
    %v239 = vunpack.c.l.b16 %v154
    %v240 = vunpack.c.h.b16 %v154
    %v241 = vunpack.c.l.b16 %v155
    %v242 = vunpack.c.h.b16 %v155
    %v243 = vunpack.c.l.b16 %v156
    %v244 = vunpack.c.h.b16 %v156
    %v245 = vunpack.c.l.b16 %v157
    %v246 = vunpack.c.h.b16 %v157
    %v247 = vunpack.c.l.b16 %v158
    %v248 = vunpack.c.h.b16 %v158
    %v249 = vunpack.c.l.b16 %v159
    %v250 = vunpack.c.h.b16 %v159
    %v251 = vunpack.c.l.b16 %v160
    %v252 = vunpack.c.h.b16 %v160
    %v253 = vunpack.c.l.b16 %v161
    %v254 = vunpack.c.h.b16 %v161
    %v255 = vunpack.c.l.b16 %v162
    %v256 = vunpack.c.h.b16 %v162
    %v257 = vunpack.c.l.b16 %v163
    %v258 = vunpack.c.h.b16 %v163
    %v259 = vunpack.c.l.b16 %v164
    %v260 = vunpack.c.h.b16 %v164
    %v261 = vunpack.c.l.b16 %v165
    %v262 = vunpack.c.h.b16 %v165
    %v263 = vunpack.c.l.b16 %v166
    %v264 = vunpack.c.h.b16 %v166
    %v265 = vunpack.c.l.b16 %v167
    %v266 = vunpack.c.h.b16 %v167
    %v267 = vunpack.c.l.b16 %v168
    %v268 = vunpack.c.h.b16 %v168
    %v269 = vunpack.c.l.b16 %v169
    %v270 = vunpack.c.h.b16 %v169
    %v271 = vunpack.c.l.b16 %v170
    %v272 = vunpack.c.h.b16 %v170
    %v273 = vunpack.c.l.b16 %v171
    %v274 = vunpack.c.h.b16 %v171
    %v275 = vunpack.c.l.b16 %v172
    %v276 = vunpack.c.h.b16 %v172
    %v277 = vunpack.c.l.b16 %v173
    %v278 = vunpack.c.h.b16 %v173
    %v279 = vunpack.c.l.b16 %v174
    %v280 = vunpack.c.h.b16 %v174
    %v281 = vunpack.c.l.b16 %v175
    %v282 = vunpack.c.h.b16 %v175
    %v283 = vunpack.c.l.b16 %v176
    %v284 = vunpack.c.h.b16 %v176
    %v285 = vpack.c.b16 %v223, %v221
    %v286 = vpack.c.b16 %v224, %v222
    %v287 = vpack.c.b16 %v227, %v225
    %v288 = vpack.c.b16 %v228, %v226
    %v289 = vpack.c.b16 %v231, %v229
    %v290 = vpack.c.b16 %v232, %v230
    %v291 = vpack.c.b16 %v235, %v233
    %v292 = vpack.c.b16 %v236, %v234
    %v293 = vpack.c.b16 %v239, %v237
    %v294 = vpack.c.b16 %v240, %v238
    %v295 = vpack.c.b16 %v243, %v241
    %v296 = vpack.c.b16 %v244, %v242
    %v297 = vpack.c.b16 %v247, %v245
    %v298 = vpack.c.b16 %v248, %v246
    %v299 = vpack.c.b16 %v251, %v249
    %v300 = vpack.c.b16 %v252, %v250
    %v301 = vpack.c.b16 %v255, %v253
    %v302 = vpack.c.b16 %v256, %v254
    %v303 = vpack.c.b16 %v259, %v257
    %v304 = vpack.c.b16 %v260, %v258
    %v305 = vpack.c.b16 %v263, %v261
    %v306 = vpack.c.b16 %v264, %v262
    %v307 = vpack.c.b16 %v267, %v265
    %v308 = vpack.c.b16 %v268, %v266
    %v309 = vpack.c.b16 %v271, %v269
    %v310 = vpack.c.b16 %v272, %v270
    %v311 = vpack.c.b16 %v275, %v273
    %v312 = vpack.c.b16 %v276, %v274
    %v313 = vpack.c.b16 %v279, %v277
    %v314 = vpack.c.b16 %v280, %v278
    %v315 = vpack.c.b16 %v283, %v281
    %v316 = vpack.c.b16 %v284, %v282
    %349 = vmatprep.subr.bf16.mxu0 %v286
    %350 = vmatpush1.bf16.msra.mxu0 %v285
    %351 = vmatprep.subr.bf16.mxu0 %v288
    %352 = vmatpush1.bf16.msra.mxu0 %v287
    %353 = vmatprep.subr.bf16.mxu0 %v290
    %354 = vmatpush1.bf16.msra.mxu0 %v289
    %355 = vmatprep.subr.bf16.mxu0 %v292
    %356 = vmatpush1.bf16.msra.mxu0 %v291
    %357 = vmatprep.subr.bf16.mxu0 %v294
    %358 = vmatpush1.bf16.msra.mxu0 %v293
    %359 = vmatprep.subr.bf16.mxu0 %v296
    %360 = vmatpush1.bf16.msra.mxu0 %v295
    %361 = vmatprep.subr.bf16.mxu0 %v298
    %362 = vmatpush1.bf16.msra.mxu0 %v297
    %363 = vmatprep.subr.bf16.mxu0 %v300
    %364 = vmatpush1.bf16.msra.mxu0 %v299
    %365 = vmatprep.subr.bf16.mxu0 %v302
    %366 = vmatpush1.bf16.msra.mxu0 %v301
    %367 = vmatprep.subr.bf16.mxu0 %v304
    %368 = vmatpush1.bf16.msra.mxu0 %v303
    %369 = vmatprep.subr.bf16.mxu0 %v306
    %370 = vmatpush1.bf16.msra.mxu0 %v305
    %371 = vmatprep.subr.bf16.mxu0 %v308
    %372 = vmatpush1.bf16.msra.mxu0 %v307
    %373 = vmatprep.subr.bf16.mxu0 %v310
    %374 = vmatpush1.bf16.msra.mxu0 %v309
    %375 = vmatprep.subr.bf16.mxu0 %v312
    %376 = vmatpush1.bf16.msra.mxu0 %v311
    %377 = vmatprep.subr.bf16.mxu0 %v314
    %378 = vmatpush1.bf16.msra.mxu0 %v313
    %379 = vmatprep.subr.bf16.mxu0 %v316
    %380 = vmatpush1.bf16.msra.mxu0 %v315
    %381 = vmatprep.mubr.bf16.mxu0 %v120
    %382 = vmatmul.mubr.bf16.gmra.mrb[0].mxu0 %v119
    %v383 = vpop.f32.mrb[0].mxu0
    %v384 = vadd.f32 %v182, %v383
    %v385 = vpop.f32.mrb[0].mxu0
    %v386 = vadd.f32 %v186, %v385
    %v387 = vpop.f32.mrb[0].mxu0
    %v388 = vadd.f32 %v182, %v387
    %v389 = vpop.f32.mrb[0].mxu0
    %v390 = vadd.f32 %v186, %v389
    %391 = vmatprep.mubr.bf16.mxu0 %v122
    %392 = vmatmul.mubr.bf16.gmra.mrb[0].mxu0 %v121
    %v393 = vpop.f32.mrb[0].mxu0
    %v394 = vadd.f32 %v182, %v393
    %v395 = vpop.f32.mrb[0].mxu0
    %v396 = vadd.f32 %v186, %v395
    %v397 = vpop.f32.mrb[0].mxu0
    %v398 = vadd.f32 %v182, %v397
    %v399 = vpop.f32.mrb[0].mxu0
    %v400 = vadd.f32 %v186, %v399
    %401 = vmatprep.mubr.bf16.mxu0 %v124
    %402 = vmatmul.mubr.bf16.gmra.mrb[0].mxu0 %v123
    %v403 = vpop.f32.mrb[0].mxu0
    %v404 = vadd.f32 %v182, %v403
    %v405 = vpop.f32.mrb[0].mxu0
    %v406 = vadd.f32 %v186, %v405
    %v407 = vpop.f32.mrb[0].mxu0
    %v408 = vadd.f32 %v182, %v407
    %v409 = vpop.f32.mrb[0].mxu0
    %v410 = vadd.f32 %v186, %v409
    %411 = vmatprep.mubr.bf16.mxu0 %v126
    %412 = vmatmul.mubr.bf16.gmra.mrb[0].mxu0 %v125
    %v413 = vpop.f32.mrb[0].mxu0
    %v414 = vadd.f32 %v182, %v413
    %v415 = vpop.f32.mrb[0].mxu0
    %v416 = vadd.f32 %v186, %v415
    %v417 = vpop.f32.mrb[0].mxu0
    %v418 = vadd.f32 %v182, %v417
    %v419 = vpop.f32.mrb[0].mxu0
    %v420 = vadd.f32 %v186, %v419
    %421 = vmatprep.mubr.bf16.mxu0 %v128
    %422 = vmatmul.mubr.bf16.gmra.mrb[0].mxu0 %v127
    %v423 = vpop.f32.mrb[0].mxu0
    %v424 = vadd.f32 %v182, %v423
    %v425 = vpop.f32.mrb[0].mxu0
    %v426 = vadd.f32 %v186, %v425
    %v427 = vpop.f32.mrb[0].mxu0
    %v428 = vadd.f32 %v182, %v427
    %v429 = vpop.f32.mrb[0].mxu0
    %v430 = vadd.f32 %v186, %v429
    %431 = vmatprep.mubr.bf16.mxu0 %v130
    %432 = vmatmul.mubr.bf16.gmra.mrb[0].mxu0 %v129
    %v433 = vpop.f32.mrb[0].mxu0
    %v434 = vadd.f32 %v182, %v433
    %v435 = vpop.f32.mrb[0].mxu0
    %v436 = vadd.f32 %v186, %v435
    %v437 = vpop.f32.mrb[0].mxu0
    %v438 = vadd.f32 %v182, %v437
    %v439 = vpop.f32.mrb[0].mxu0
    %v440 = vadd.f32 %v186, %v439
    %441 = vmatprep.mubr.bf16.mxu0 %v132
    %442 = vmatmul.mubr.bf16.gmra.mrb[0].mxu0 %v131
    %v443 = vpop.f32.mrb[0].mxu0
    %v444 = vadd.f32 %v182, %v443
    %v445 = vpop.f32.mrb[0].mxu0
    %v446 = vadd.f32 %v186, %v445
    %v447 = vpop.f32.mrb[0].mxu0
    %v448 = vadd.f32 %v182, %v447
    %v449 = vpop.f32.mrb[0].mxu0
    %v450 = vadd.f32 %v186, %v449
    %451 = vmatprep.mubr.bf16.mxu0 %v134
    %452 = vmatmul.mubr.bf16.gmra.mrb[0].mxu0 %v133
    %v453 = vpop.f32.mrb[0].mxu0
    %v454 = vadd.f32 %v182, %v453
    %v455 = vpop.f32.mrb[0].mxu0
    %v456 = vadd.f32 %v186, %v455
    %v457 = vpop.f32.mrb[0].mxu0
    %v458 = vadd.f32 %v182, %v457
    %v459 = vpop.f32.mrb[0].mxu0
    %v460 = vadd.f32 %v186, %v459
    %461 = vmatprep.mubr.bf16.mxu0 %v136
    %462 = vmatmul.mubr.bf16.gmra.mrb[0].mxu0 %v135
    %v463 = vpop.f32.mrb[0].mxu0
    %v464 = vadd.f32 %v182, %v463
    %v465 = vpop.f32.mrb[0].mxu0
    %v466 = vadd.f32 %v186, %v465
    %v467 = vpop.f32.mrb[0].mxu0
    %v468 = vadd.f32 %v182, %v467
    %v469 = vpop.f32.mrb[0].mxu0
    %v470 = vadd.f32 %v186, %v469
    %471 = vmatprep.mubr.bf16.mxu0 %v138
    %472 = vmatmul.mubr.bf16.gmra.mrb[0].mxu0 %v137
    %v473 = vpop.f32.mrb[0].mxu0
    %v474 = vadd.f32 %v182, %v473
    %v475 = vpop.f32.mrb[0].mxu0
    %v476 = vadd.f32 %v186, %v475
    %v477 = vpop.f32.mrb[0].mxu0
    %v478 = vadd.f32 %v182, %v477
    %v479 = vpop.f32.mrb[0].mxu0
    %v480 = vadd.f32 %v186, %v479
    %481 = vmatprep.mubr.bf16.mxu0 %v140
    %482 = vmatmul.mubr.bf16.gmra.mrb[0].mxu0 %v139
    %v483 = vpop.f32.mrb[0].mxu0
    %v484 = vadd.f32 %v182, %v483
    %v485 = vpop.f32.mrb[0].mxu0
    %v486 = vadd.f32 %v186, %v485
    %v487 = vpop.f32.mrb[0].mxu0
    %v488 = vadd.f32 %v182, %v487
    %v489 = vpop.f32.mrb[0].mxu0
    %v490 = vadd.f32 %v186, %v489
    %491 = vmatprep.mubr.bf16.mxu0 %v142
    %492 = vmatmul.mubr.bf16.gmra.mrb[0].mxu0 %v141
    %v493 = vpop.f32.mrb[0].mxu0
    %v494 = vadd.f32 %v182, %v493
    %v495 = vpop.f32.mrb[0].mxu0
    %v496 = vadd.f32 %v186, %v495
    %v497 = vpop.f32.mrb[0].mxu0
    %v498 = vadd.f32 %v182, %v497
    %v499 = vpop.f32.mrb[0].mxu0
    %v500 = vadd.f32 %v186, %v499
    %501 = vmatprep.mubr.bf16.mxu0 %v144
    %502 = vmatmul.mubr.bf16.gmra.mrb[0].mxu0 %v143
    %v503 = vpop.f32.mrb[0].mxu0
    %v504 = vadd.f32 %v182, %v503
    %v505 = vpop.f32.mrb[0].mxu0
    %v506 = vadd.f32 %v186, %v505
    %v507 = vpop.f32.mrb[0].mxu0
    %v508 = vpop.f32.mrb[0].mxu0
    %509 = vdwg.mxu0
    %v510 = vmul.f32 %v384, 0.5
    %v511 = vmul.f32 %v386, 0.5
    %v512 = vmul.f32 %v388, 0.5
    %v513 = vmul.f32 %v390, 0.5
    %v514 = vmul.f32 %v394, 0.5
    %v515 = vmul.f32 %v396, 0.5
    %v516 = vmul.f32 %v398, 0.5
    %v517 = vmul.f32 %v400, 0.5
    %v518 = vmul.f32 %v404, 0.5
    %v519 = vmul.f32 %v406, 0.5
    %v520 = vmul.f32 %v408, 0.5
    %v521 = vmul.f32 %v410, 0.5
    %v522 = vmul.f32 %v414, 0.5
    %v523 = vmul.f32 %v416, 0.5
    %v524 = vmul.f32 %v418, 0.5
    %v525 = vmul.f32 %v420, 0.5
    %v526 = vmul.f32 %v424, 0.5
    %v527 = vmul.f32 %v426, 0.5
    %v528 = vmul.f32 %v428, 0.5
    %v529 = vmul.f32 %v430, 0.5
    %v530 = vmul.f32 %v434, 0.5
    %v531 = vmul.f32 %v436, 0.5
    %v532 = vmul.f32 %v438, 0.5
    %v533 = vmul.f32 %v440, 0.5
    %v534 = vmul.f32 %v444, 0.5
    %v535 = vmul.f32 %v446, 0.5
    %v536 = vmul.f32 %v448, 0.5
    %v537 = vmul.f32 %v450, 0.5
    %v538 = vmul.f32 %v454, 0.5
    %v539 = vmul.f32 %v456, 0.5
    %v540 = vmul.f32 %v458, 0.5
    %v541 = vmul.f32 %v460, 0.5
    %v542 = vmul.f32 %v464, 0.5
    %v543 = vmul.f32 %v466, 0.5
    %v544 = vmul.f32 %v468, 0.5
    %v545 = vmul.f32 %v470, 0.5
    %v546 = vmul.f32 %v474, 0.5
    %v547 = vmul.f32 %v476, 0.5
    %v548 = vmul.f32 %v478, 0.5
    %v549 = vmul.f32 %v480, 0.5
    %v550 = vmul.f32 %v484, 0.5
    %v551 = vmul.f32 %v486, 0.5
    %v552 = vmul.f32 %v488, 0.5
    %v553 = vmul.f32 %v490, 0.5
    %v554 = vmul.f32 %v494, 0.5
    %v555 = vmul.f32 %v496, 0.5
    %v556 = vmul.f32 %v498, 0.5
    %v557 = vmul.f32 %v500, 0.5
    %v558 = vmul.f32 %v504, 0.5
    %v559 = vmul.f32 %v506, 0.5
    %v560 = vmul.f32 %v384, 0.70710677
    %v561 = vmul.f32 %v386, 0.70710677
    %v562 = vmul.f32 %v388, 0.70710677
    %v563 = vmul.f32 %v390, 0.70710677
    %v564 = vmul.f32 %v394, 0.70710677
    %v565 = vmul.f32 %v396, 0.70710677
    %v566 = vmul.f32 %v398, 0.70710677
    %v567 = vmul.f32 %v400, 0.70710677
    %v568 = vmul.f32 %v404, 0.70710677
    %v569 = vmul.f32 %v406, 0.70710677
    %v570 = vmul.f32 %v408, 0.70710677
    %v571 = vmul.f32 %v410, 0.70710677
    %v572 = vmul.f32 %v414, 0.70710677
    %v573 = vmul.f32 %v416, 0.70710677
    %v574 = vmul.f32 %v418, 0.70710677
    %v575 = vmul.f32 %v420, 0.70710677
    %v576 = vmul.f32 %v424, 0.70710677
    %v577 = vmul.f32 %v426, 0.70710677
    %v578 = vmul.f32 %v428, 0.70710677
    %v579 = vmul.f32 %v430, 0.70710677
    %v580 = vmul.f32 %v434, 0.70710677
    %v581 = vmul.f32 %v436, 0.70710677
    %v582 = vmul.f32 %v438, 0.70710677
    %v583 = vmul.f32 %v440, 0.70710677
    %v584 = vmul.f32 %v444, 0.70710677
    %v585 = vmul.f32 %v446, 0.70710677
    %v586 = vmul.f32 %v448, 0.70710677
    %v587 = vmul.f32 %v450, 0.70710677
    %v588 = vmul.f32 %v454, 0.70710677
    %v589 = vmul.f32 %v456, 0.70710677
    %v590 = vmul.f32 %v458, 0.70710677
    %v591 = vmul.f32 %v460, 0.70710677
    %v592 = vmul.f32 %v464, 0.70710677
    %v593 = vmul.f32 %v466, 0.70710677
    %v594 = vmul.f32 %v468, 0.70710677
    %v595 = vmul.f32 %v470, 0.70710677
    %v596 = vmul.f32 %v474, 0.70710677
    %v597 = vmul.f32 %v476, 0.70710677
    %v598 = vmul.f32 %v478, 0.70710677
    %v599 = vmul.f32 %v480, 0.70710677
    %v600 = vmul.f32 %v484, 0.70710677
    %v601 = vmul.f32 %v486, 0.70710677
    %v602 = vmul.f32 %v488, 0.70710677
    %v603 = vmul.f32 %v490, 0.70710677
    %v604 = vmul.f32 %v494, 0.70710677
    %v605 = vmul.f32 %v496, 0.70710677
    %v606 = vmul.f32 %v498, 0.70710677
    %v607 = vmul.f32 %v500, 0.70710677
    %v608 = vmul.f32 %v504, 0.70710677
    %v609 = vmul.f32 %v506, 0.70710677
    %v610 = verf.f32.pop %v560
    %v611 = verf.f32.pop %v561
    %v612 = verf.f32.pop %v562
    %v613 = verf.f32.pop %v563
    %v614 = verf.f32.pop %v564
    %v615 = verf.f32.pop %v565
    %v616 = verf.f32.pop %v566
    %v617 = verf.f32.pop %v567
    %v618 = verf.f32.pop %v568
    %v619 = verf.f32.pop %v569
    %v620 = verf.f32.pop %v570
    %v621 = verf.f32.pop %v571
    %v622 = verf.f32.pop %v572
    %v623 = verf.f32.pop %v573
    %v624 = verf.f32.pop %v574
    %v625 = verf.f32.pop %v575
    %v626 = verf.f32.pop %v576
    %v627 = verf.f32.pop %v577
    %v628 = verf.f32.pop %v578
    %v629 = verf.f32.pop %v579
    %v630 = verf.f32.pop %v580
    %v631 = verf.f32.pop %v581
    %v632 = verf.f32.pop %v582
    %v633 = verf.f32.pop %v583
    %v634 = verf.f32.pop %v584
    %v635 = verf.f32.pop %v585
    %v636 = verf.f32.pop %v586
    %v637 = verf.f32.pop %v587
    %v638 = verf.f32.pop %v588
    %v639 = verf.f32.pop %v589
    %v640 = verf.f32.pop %v590
    %v641 = verf.f32.pop %v591
    %v642 = verf.f32.pop %v592
    %v643 = verf.f32.pop %v593
    %v644 = verf.f32.pop %v594
    %v645 = verf.f32.pop %v595
    %v646 = verf.f32.pop %v596
    %v647 = verf.f32.pop %v597
    %v648 = verf.f32.pop %v598
    %v649 = verf.f32.pop %v599
    %v650 = verf.f32.pop %v600
    %v651 = verf.f32.pop %v601
    %v652 = verf.f32.pop %v602
    %v653 = verf.f32.pop %v603
    %v654 = verf.f32.pop %v604
    %v655 = verf.f32.pop %v605
    %v656 = verf.f32.pop %v606
    %v657 = verf.f32.pop %v607
    %v658 = verf.f32.pop %v608
    %v659 = verf.f32.pop %v609
    %v660 = vadd.f32 %v610, 1.0
    %v661 = vadd.f32 %v611, 1.0
    %v662 = vadd.f32 %v612, 1.0
    %v663 = vadd.f32 %v613, 1.0
    %v664 = vadd.f32 %v614, 1.0
    %v665 = vadd.f32 %v615, 1.0
    %v666 = vadd.f32 %v616, 1.0
    %v667 = vadd.f32 %v617, 1.0
    %v668 = vadd.f32 %v618, 1.0
    %v669 = vadd.f32 %v619, 1.0
    %v670 = vadd.f32 %v620, 1.0
    %v671 = vadd.f32 %v621, 1.0
    %v672 = vadd.f32 %v622, 1.0
    %v673 = vadd.f32 %v623, 1.0
    %v674 = vadd.f32 %v624, 1.0
    %v675 = vadd.f32 %v625, 1.0
    %v676 = vadd.f32 %v626, 1.0
    %v677 = vadd.f32 %v627, 1.0
    %v678 = vadd.f32 %v628, 1.0
    %v679 = vadd.f32 %v629, 1.0
    %v680 = vadd.f32 %v630, 1.0
    %v681 = vadd.f32 %v631, 1.0
    %v682 = vadd.f32 %v632, 1.0
    %v683 = vadd.f32 %v633, 1.0
    %v684 = vadd.f32 %v634, 1.0
    %v685 = vadd.f32 %v635, 1.0
    %v686 = vadd.f32 %v636, 1.0
    %v687 = vadd.f32 %v637, 1.0
    %v688 = vadd.f32 %v638, 1.0
    %v689 = vadd.f32 %v639, 1.0
    %v690 = vadd.f32 %v640, 1.0
    %v691 = vadd.f32 %v641, 1.0
    %v692 = vadd.f32 %v642, 1.0
    %v693 = vadd.f32 %v643, 1.0
    %v694 = vadd.f32 %v644, 1.0
    %v695 = vadd.f32 %v645, 1.0
    %v696 = vadd.f32 %v646, 1.0
    %v697 = vadd.f32 %v647, 1.0
    %v698 = vadd.f32 %v648, 1.0
    %v699 = vadd.f32 %v649, 1.0
    %v700 = vadd.f32 %v650, 1.0
    %v701 = vadd.f32 %v651, 1.0
    %v702 = vadd.f32 %v652, 1.0
    %v703 = vadd.f32 %v653, 1.0
    %v704 = vadd.f32 %v654, 1.0
    %v705 = vadd.f32 %v655, 1.0
    %v706 = vadd.f32 %v656, 1.0
    %v707 = vadd.f32 %v657, 1.0
    %v708 = vadd.f32 %v658, 1.0
    %v709 = vadd.f32 %v659, 1.0
    %v710 = vmul.f32 %v510, %v660
    %v711 = vmul.f32 %v511, %v661
    %v712 = vmul.f32 %v512, %v662
    %v713 = vmul.f32 %v513, %v663
    %v714 = vmul.f32 %v514, %v664
    %v715 = vmul.f32 %v515, %v665
    %v716 = vmul.f32 %v516, %v666
    %v717 = vmul.f32 %v517, %v667
    %v718 = vmul.f32 %v518, %v668
    %v719 = vmul.f32 %v519, %v669
    %v720 = vmul.f32 %v520, %v670
    %v721 = vmul.f32 %v521, %v671
    %v722 = vmul.f32 %v522, %v672
    %v723 = vmul.f32 %v523, %v673
    %v724 = vmul.f32 %v524, %v674
    %v725 = vmul.f32 %v525, %v675
    %v726 = vmul.f32 %v526, %v676
    %v727 = vmul.f32 %v527, %v677
    %v728 = vmul.f32 %v528, %v678
    %v729 = vmul.f32 %v529, %v679
    %v730 = vmul.f32 %v530, %v680
    %v731 = vmul.f32 %v531, %v681
    %v732 = vmul.f32 %v532, %v682
    %v733 = vmul.f32 %v533, %v683
    %v734 = vmul.f32 %v534, %v684
    %v735 = vmul.f32 %v535, %v685
    %v736 = vmul.f32 %v536, %v686
    %v737 = vmul.f32 %v537, %v687
    %v738 = vmul.f32 %v538, %v688
    %v739 = vmul.f32 %v539, %v689
    %v740 = vmul.f32 %v540, %v690
    %v741 = vmul.f32 %v541, %v691
    %v742 = vmul.f32 %v542, %v692
    %v743 = vmul.f32 %v543, %v693
    %v744 = vmul.f32 %v544, %v694
    %v745 = vmul.f32 %v545, %v695
    %v746 = vmul.f32 %v546, %v696
    %v747 = vmul.f32 %v547, %v697
    %v748 = vmul.f32 %v548, %v698
    %v749 = vmul.f32 %v549, %v699
    %v750 = vmul.f32 %v550, %v700
    %v751 = vmul.f32 %v551, %v701
    %v752 = vmul.f32 %v552, %v702
    %v753 = vmul.f32 %v553, %v703
    %v754 = vmul.f32 %v554, %v704
    %v755 = vmul.f32 %v555, %v705
    %v756 = vmul.f32 %v556, %v706
    %v757 = vmul.f32 %v557, %v707
    %v758 = vmul.f32 %v558, %v708
    %v759 = vmul.f32 %v559, %v709
    %v760 = vpack.c.bf16 %v712, %v710
    %v761 = vpack.c.bf16 %v713, %v711
    %v762 = vpack.c.bf16 %v716, %v714
    %v763 = vpack.c.bf16 %v717, %v715
    %v764 = vpack.c.bf16 %v720, %v718
    %v765 = vpack.c.bf16 %v721, %v719
    %v766 = vpack.c.bf16 %v724, %v722
    %v767 = vpack.c.bf16 %v725, %v723
    %v768 = vpack.c.bf16 %v728, %v726
    %v769 = vpack.c.bf16 %v729, %v727
    %v770 = vpack.c.bf16 %v732, %v730
    %v771 = vpack.c.bf16 %v733, %v731
    %v772 = vpack.c.bf16 %v736, %v734
    %v773 = vpack.c.bf16 %v737, %v735
    %v774 = vpack.c.bf16 %v740, %v738
    %v775 = vpack.c.bf16 %v741, %v739
    %v776 = vpack.c.bf16 %v744, %v742
    %v777 = vpack.c.bf16 %v745, %v743
    %v778 = vpack.c.bf16 %v748, %v746
    %v779 = vpack.c.bf16 %v749, %v747
    %v780 = vpack.c.bf16 %v752, %v750
    %v781 = vpack.c.bf16 %v753, %v751
    %v782 = vpack.c.bf16 %v756, %v754
    %v783 = vpack.c.bf16 %v757, %v755
    %v784 = vpack.c.bf16 %v758, %v758
    %v785 = vpack.c.bf16 %v759, %v759
    %v786 = vld [vmem:[#allocation7] sm:$0xf]
    %v787 = vld [vmem:[#allocation7 + $0x4] sm:$0xf]
    %v788 = vld [vmem:[#allocation7 + $0x8] sm:$0xf]
    %v789 = vld [vmem:[#allocation7 + $0xc] sm:$0xf]
    %v790 = vld [vmem:[#allocation7 + $0x10] sm:$0xf]
    %v791 = vld [vmem:[#allocation7 + $0x14] sm:$0xf]
    %v792 = vld [vmem:[#allocation7 + $0x18] sm:$0xf]
    %v793 = vld [vmem:[#allocation7 + $0x1c] sm:$0xf]
    %v794 = vld [vmem:[#allocation7 + $0x20] sm:$0xf]
    %v795 = vld [vmem:[#allocation7 + $0x24] sm:$0xf]
    %v796 = vld [vmem:[#allocation7 + $0x28] sm:$0xf]
    %v797 = vld [vmem:[#allocation7 + $0x2c] sm:$0xf]
    %v798 = vld [vmem:[#allocation7 + $0x30] sm:$0xf]
    %v799 = vld [vmem:[#allocation7 + $0x34] sm:$0xf]
    %v800 = vld [vmem:[#allocation7 + $0x38] sm:$0xf]
    %v801 = vld [vmem:[#allocation7 + $0x3c] sm:$0xf]
    %v802 = vld [vmem:[#allocation7 + $0x40] sm:$0xf]
    %v803 = vld [vmem:[#allocation7 + $0x44] sm:$0xf]
    %v804 = vld [vmem:[#allocation7 + $0x48] sm:$0xf]
    %v805 = vld [vmem:[#allocation7 + $0x4c] sm:$0xf]
    %v806 = vld [vmem:[#allocation7 + $0x50] sm:$0xf]
    %v807 = vld [vmem:[#allocation7 + $0x54] sm:$0xf]
    %v808 = vld [vmem:[#allocation7 + $0x58] sm:$0xf]
    %v809 = vld [vmem:[#allocation7 + $0x5c] sm:$0xf]
    %v810 = vld [vmem:[#allocation7 + $0x60] sm:$0xf]
    %v811 = vld [vmem:[#allocation7 + $0x64] sm:$0xf]
    %v812 = vld [vmem:[#allocation7 + $0x68] sm:$0xf]
    %v813 = vld [vmem:[#allocation7 + $0x6c] sm:$0xf]
    %v814 = vld [vmem:[#allocation7 + $0x70] sm:$0xf]
    %v815 = vld [vmem:[#allocation7 + $0x74] sm:$0xf]
    %v816 = vld [vmem:[#allocation7 + $0x78] sm:$0xf]
    %v817 = vld [vmem:[#allocation7 + $0x7c] sm:$0xf]
    %v818 = vld [vmem:[%s4] sm:$0x1]
    %v820 = vlaneseq
    %v821 = vshrl.u32 %v820, 7
    %v822 = vsub.s32 0, %v821
    %v823 = vrot.slane %v818, %v822
    %v857 = vunpack.c.l.b16 %v786
    %v858 = vunpack.c.l.b16 %v787
    %v859 = vunpack.c.l.b16 %v788
    %v860 = vunpack.c.l.b16 %v789
    %v861 = vunpack.c.l.b16 %v790
    %v862 = vunpack.c.l.b16 %v791
    %v863 = vunpack.c.l.b16 %v792
    %v864 = vunpack.c.l.b16 %v793
    %v865 = vunpack.c.l.b16 %v794
    %v866 = vunpack.c.l.b16 %v795
    %v867 = vunpack.c.l.b16 %v796
    %v868 = vunpack.c.l.b16 %v797
    %v869 = vunpack.c.l.b16 %v798
    %v870 = vunpack.c.l.b16 %v799
    %v871 = vunpack.c.l.b16 %v800
    %v872 = vunpack.c.l.b16 %v801
    %v873 = vunpack.c.l.b16 %v802
    %v874 = vunpack.c.l.b16 %v803
    %v875 = vunpack.c.l.b16 %v804
    %v876 = vunpack.c.l.b16 %v805
    %v877 = vunpack.c.l.b16 %v806
    %v878 = vunpack.c.l.b16 %v807
    %v879 = vunpack.c.l.b16 %v808
    %v880 = vunpack.c.l.b16 %v809
    %v881 = vunpack.c.l.b16 %v810
    %v882 = vunpack.c.l.b16 %v811
    %v883 = vunpack.c.l.b16 %v812
    %v884 = vunpack.c.l.b16 %v813
    %v885 = vunpack.c.l.b16 %v814
    %v886 = vunpack.c.l.b16 %v815
    %v887 = vunpack.c.l.b16 %v816
    %v888 = vunpack.c.l.b16 %v817
    %v889 = vpack.c.b16 %v858, %v857
    %v890 = vpack.c.b16 %v860, %v859
    %v891 = vpack.c.b16 %v862, %v861
    %v892 = vpack.c.b16 %v864, %v863
    %v893 = vpack.c.b16 %v866, %v865
    %v894 = vpack.c.b16 %v868, %v867
    %v895 = vpack.c.b16 %v870, %v869
    %v896 = vpack.c.b16 %v872, %v871
    %v897 = vpack.c.b16 %v874, %v873
    %v898 = vpack.c.b16 %v876, %v875
    %v899 = vpack.c.b16 %v878, %v877
    %v900 = vpack.c.b16 %v880, %v879
    %v901 = vpack.c.b16 %v882, %v881
    %v902 = vpack.c.b16 %v884, %v883
    %v903 = vpack.c.b16 %v886, %v885
    %v904 = vpack.c.b16 %v888, %v887
    %921 = vmatprep.subr.bf16.mxu0 0
    %922 = vmatpush1.bf16.msra.mxu0 %v889
    %923 = vmatprep.subr.bf16.mxu0 0
    %924 = vmatpush1.bf16.msra.mxu0 %v890
    %925 = vmatprep.subr.bf16.mxu0 0
    %926 = vmatpush1.bf16.msra.mxu0 %v891
    %927 = vmatprep.subr.bf16.mxu0 0
    %928 = vmatpush1.bf16.msra.mxu0 %v892
    %929 = vmatprep.subr.bf16.mxu0 0
    %930 = vmatpush1.bf16.msra.mxu0 %v893
    %931 = vmatprep.subr.bf16.mxu0 0
    %932 = vmatpush1.bf16.msra.mxu0 %v894
    %933 = vmatprep.subr.bf16.mxu0 0
    %934 = vmatpush1.bf16.msra.mxu0 %v895
    %935 = vmatprep.subr.bf16.mxu0 0
    %936 = vmatpush1.bf16.msra.mxu0 %v896
    %937 = vmatprep.subr.bf16.mxu0 0
    %938 = vmatpush1.bf16.msra.mxu0 %v897
    %939 = vmatprep.subr.bf16.mxu0 0
    %940 = vmatpush1.bf16.msra.mxu0 %v898
    %941 = vmatprep.subr.bf16.mxu0 0
    %942 = vmatpush1.bf16.msra.mxu0 %v899
    %943 = vmatprep.subr.bf16.mxu0 0
    %944 = vmatpush1.bf16.msra.mxu0 %v900
    %945 = vmatprep.subr.bf16.mxu0 0
    %946 = vmatpush1.bf16.msra.mxu0 %v901
    %947 = vmatprep.subr.bf16.mxu0 0
    %948 = vmatpush1.bf16.msra.mxu0 %v902
    %949 = vmatprep.subr.bf16.mxu0 0
    %950 = vmatpush1.bf16.msra.mxu0 %v903
    %951 = vmatprep.subr.bf16.mxu0 0
    %952 = vmatpush1.bf16.msra.mxu0 %v904
    %953 = vmatprep.mubr.bf16.mxu0 %v761
    %954 = vmatmul.mubr.bf16.gmra.mrb[0].mxu0 %v760
    %v955 = vpop.f32.mrb[0].mxu0
    %v956 = vadd.f32 %v823, %v955
    %v957 = vpop.f32.mrb[0].mxu0
    %v958 = vpop.f32.mrb[0].mxu0
    %v959 = vadd.f32 %v823, %v958
    %v960 = vpop.f32.mrb[0].mxu0
    %961 = vmatprep.mubr.bf16.mxu0 %v763
    %962 = vmatmul.mubr.bf16.gmra.mrb[0].mxu0 %v762
    %v963 = vpop.f32.mrb[0].mxu0
    %v964 = vadd.f32 %v823, %v963
    %v965 = vpop.f32.mrb[0].mxu0
    %v966 = vpop.f32.mrb[0].mxu0
    %v967 = vadd.f32 %v823, %v966
    %v968 = vpop.f32.mrb[0].mxu0
    %969 = vmatprep.mubr.bf16.mxu0 %v765
    %970 = vmatmul.mubr.bf16.gmra.mrb[0].mxu0 %v764
    %v971 = vpop.f32.mrb[0].mxu0
    %v972 = vadd.f32 %v823, %v971
    %v973 = vpop.f32.mrb[0].mxu0
    %v974 = vpop.f32.mrb[0].mxu0
    %v975 = vadd.f32 %v823, %v974
    %v976 = vpop.f32.mrb[0].mxu0
    %977 = vmatprep.mubr.bf16.mxu0 %v767
    %978 = vmatmul.mubr.bf16.gmra.mrb[0].mxu0 %v766
    %v979 = vpop.f32.mrb[0].mxu0
    %v980 = vadd.f32 %v823, %v979
    %v981 = vpop.f32.mrb[0].mxu0
    %v982 = vpop.f32.mrb[0].mxu0
    %v983 = vadd.f32 %v823, %v982
    %v984 = vpop.f32.mrb[0].mxu0
    %985 = vmatprep.mubr.bf16.mxu0 %v769
    %986 = vmatmul.mubr.bf16.gmra.mrb[0].mxu0 %v768
    %v987 = vpop.f32.mrb[0].mxu0
    %v988 = vadd.f32 %v823, %v987
    %v989 = vpop.f32.mrb[0].mxu0
    %v990 = vpop.f32.mrb[0].mxu0
    %v991 = vadd.f32 %v823, %v990
    %v992 = vpop.f32.mrb[0].mxu0
    %993 = vmatprep.mubr.bf16.mxu0 %v771
    %994 = vmatmul.mubr.bf16.gmra.mrb[0].mxu0 %v770
    %v995 = vpop.f32.mrb[0].mxu0
    %v996 = vadd.f32 %v823, %v995
    %v997 = vpop.f32.mrb[0].mxu0
    %v998 = vpop.f32.mrb[0].mxu0
    %v999 = vadd.f32 %v823, %v998
    %v1000 = vpop.f32.mrb[0].mxu0
    %1001 = vmatprep.mubr.bf16.mxu0 %v773
    %1002 = vmatmul.mubr.bf16.gmra.mrb[0].mxu0 %v772
    %v1003 = vpop.f32.mrb[0].mxu0
    %v1004 = vadd.f32 %v823, %v1003
    %v1005 = vpop.f32.mrb[0].mxu0
    %v1006 = vpop.f32.mrb[0].mxu0
    %v1007 = vadd.f32 %v823, %v1006
    %v1008 = vpop.f32.mrb[0].mxu0
    %1009 = vmatprep.mubr.bf16.mxu0 %v775
    %1010 = vmatmul.mubr.bf16.gmra.mrb[0].mxu0 %v774
    %v1011 = vpop.f32.mrb[0].mxu0
    %v1012 = vadd.f32 %v823, %v1011
    %v1013 = vpop.f32.mrb[0].mxu0
    %v1014 = vpop.f32.mrb[0].mxu0
    %v1015 = vadd.f32 %v823, %v1014
    %v1016 = vpop.f32.mrb[0].mxu0
    %1017 = vmatprep.mubr.bf16.mxu0 %v777
    %1018 = vmatmul.mubr.bf16.gmra.mrb[0].mxu0 %v776
    %v1019 = vpop.f32.mrb[0].mxu0
    %v1020 = vadd.f32 %v823, %v1019
    %v1021 = vpop.f32.mrb[0].mxu0
    %v1022 = vpop.f32.mrb[0].mxu0
    %v1023 = vadd.f32 %v823, %v1022
    %v1024 = vpop.f32.mrb[0].mxu0
    %1025 = vmatprep.mubr.bf16.mxu0 %v779
    %1026 = vmatmul.mubr.bf16.gmra.mrb[0].mxu0 %v778
    %v1027 = vpop.f32.mrb[0].mxu0
    %v1028 = vadd.f32 %v823, %v1027
    %v1029 = vpop.f32.mrb[0].mxu0
    %v1030 = vpop.f32.mrb[0].mxu0
    %v1031 = vadd.f32 %v823, %v1030
    %v1032 = vpop.f32.mrb[0].mxu0
    %1033 = vmatprep.mubr.bf16.mxu0 %v781
    %1034 = vmatmul.mubr.bf16.gmra.mrb[0].mxu0 %v780
    %v1035 = vpop.f32.mrb[0].mxu0
    %v1036 = vadd.f32 %v823, %v1035
    %v1037 = vpop.f32.mrb[0].mxu0
    %v1038 = vpop.f32.mrb[0].mxu0
    %v1039 = vadd.f32 %v823, %v1038
    %v1040 = vpop.f32.mrb[0].mxu0
    %1041 = vmatprep.mubr.bf16.mxu0 %v783
    %1042 = vmatmul.mubr.bf16.gmra.mrb[0].mxu0 %v782
    %v1043 = vpop.f32.mrb[0].mxu0
    %v1044 = vadd.f32 %v823, %v1043
    %v1045 = vpop.f32.mrb[0].mxu0
    %v1046 = vpop.f32.mrb[0].mxu0
    %v1047 = vadd.f32 %v823, %v1046
    %v1048 = vpop.f32.mrb[0].mxu0
    %1049 = vmatprep.mubr.bf16.mxu0 %v785
    %1050 = vmatmul.mubr.bf16.gmra.mrb[0].mxu0 %v784
    %v1051 = vpop.f32.mrb[0].mxu0
    %v1052 = vadd.f32 %v823, %v1051
    %v1053 = vpop.f32.mrb[0].mxu0
    %v1054 = vpop.f32.mrb[0].mxu0
    %v1055 = vpop.f32.mrb[0].mxu0
    %1056 = vdwg.mxu0
    %1057 = vadd.xlane.f32.xlu0 %v956
    %v1058 = vpop.xlane.xlu0 %1057
    %1059 = vadd.xlane.f32.xlu0 %v959
    %v1060 = vpop.xlane.xlu0 %1059
    %1061 = vadd.xlane.f32.xlu0 %v964
    %v1062 = vpop.xlane.xlu0 %1061
    %1063 = vadd.xlane.f32.xlu0 %v967
    %v1064 = vpop.xlane.xlu0 %1063
    %1065 = vadd.xlane.f32.xlu0 %v972
    %v1066 = vpop.xlane.xlu0 %1065
    %1067 = vadd.xlane.f32.xlu0 %v975
    %v1068 = vpop.xlane.xlu0 %1067
    %1069 = vadd.xlane.f32.xlu0 %v980
    %v1070 = vpop.xlane.xlu0 %1069
    %1071 = vadd.xlane.f32.xlu0 %v983
    %v1072 = vpop.xlane.xlu0 %1071
    %1073 = vadd.xlane.f32.xlu0 %v988
    %v1074 = vpop.xlane.xlu0 %1073
    %1075 = vadd.xlane.f32.xlu0 %v991
    %v1076 = vpop.xlane.xlu0 %1075
    %1077 = vadd.xlane.f32.xlu0 %v996
    %v1078 = vpop.xlane.xlu0 %1077
    %1079 = vadd.xlane.f32.xlu0 %v999
    %v1080 = vpop.xlane.xlu0 %1079
    %1081 = vadd.xlane.f32.xlu0 %v1004
    %v1082 = vpop.xlane.xlu0 %1081
    %1083 = vadd.xlane.f32.xlu0 %v1007
    %v1084 = vpop.xlane.xlu0 %1083
    %1085 = vadd.xlane.f32.xlu0 %v1012
    %v1086 = vpop.xlane.xlu0 %1085
    %1087 = vadd.xlane.f32.xlu0 %v1015
    %v1088 = vpop.xlane.xlu0 %1087
    %1089 = vadd.xlane.f32.xlu0 %v1020
    %v1090 = vpop.xlane.xlu0 %1089
    %1091 = vadd.xlane.f32.xlu0 %v1023
    %v1092 = vpop.xlane.xlu0 %1091
    %1093 = vadd.xlane.f32.xlu0 %v1028
    %v1094 = vpop.xlane.xlu0 %1093
    %1095 = vadd.xlane.f32.xlu0 %v1031
    %v1096 = vpop.xlane.xlu0 %1095
    %1097 = vadd.xlane.f32.xlu0 %v1036
    %v1098 = vpop.xlane.xlu0 %1097
    %1099 = vadd.xlane.f32.xlu0 %v1039
    %v1100 = vpop.xlane.xlu0 %1099
    %1101 = vadd.xlane.f32.xlu0 %v1044
    %v1102 = vpop.xlane.xlu0 %1101
    %1103 = vadd.xlane.f32.xlu0 %v1047
    %v1104 = vpop.xlane.xlu0 %1103
    %1105 = vadd.xlane.f32.xlu0 %v1052
    %v1106 = vpop.xlane.xlu0 %1105
    %v1107 = vrcp.pop 128.0
    %v1108 = vmul.f32 %v1058, %v1107
    %v1109 = vmul.f32 %v1060, %v1107
    %v1110 = vmul.f32 %v1062, %v1107
    %v1111 = vmul.f32 %v1064, %v1107
    %v1112 = vmul.f32 %v1066, %v1107
    %v1113 = vmul.f32 %v1068, %v1107
    %v1114 = vmul.f32 %v1070, %v1107
    %v1115 = vmul.f32 %v1072, %v1107
    %v1116 = vmul.f32 %v1074, %v1107
    %v1117 = vmul.f32 %v1076, %v1107
    %v1118 = vmul.f32 %v1078, %v1107
    %v1119 = vmul.f32 %v1080, %v1107
    %v1120 = vmul.f32 %v1082, %v1107
    %v1121 = vmul.f32 %v1084, %v1107
    %v1122 = vmul.f32 %v1086, %v1107
    %v1123 = vmul.f32 %v1088, %v1107
    %v1124 = vmul.f32 %v1090, %v1107
    %v1125 = vmul.f32 %v1092, %v1107
    %v1126 = vmul.f32 %v1094, %v1107
    %v1127 = vmul.f32 %v1096, %v1107
    %v1128 = vmul.f32 %v1098, %v1107
    %v1129 = vmul.f32 %v1100, %v1107
    %v1130 = vmul.f32 %v1102, %v1107
    %v1131 = vmul.f32 %v1104, %v1107
    %v1132 = vmul.f32 %v1106, %v1107
    %v1133 = vsub.f32 %v956, %v1108
    %v1134 = vsub.f32 %v959, %v1109
    %v1135 = vsub.f32 %v964, %v1110
    %v1136 = vsub.f32 %v967, %v1111
    %v1137 = vsub.f32 %v972, %v1112
    %v1138 = vsub.f32 %v975, %v1113
    %v1139 = vsub.f32 %v980, %v1114
    %v1140 = vsub.f32 %v983, %v1115
    %v1141 = vsub.f32 %v988, %v1116
    %v1142 = vsub.f32 %v991, %v1117
    %v1143 = vsub.f32 %v996, %v1118
    %v1144 = vsub.f32 %v999, %v1119
    %v1145 = vsub.f32 %v1004, %v1120
    %v1146 = vsub.f32 %v1007, %v1121
    %v1147 = vsub.f32 %v1012, %v1122
    %v1148 = vsub.f32 %v1015, %v1123
    %v1149 = vsub.f32 %v1020, %v1124
    %v1150 = vsub.f32 %v1023, %v1125
    %v1151 = vsub.f32 %v1028, %v1126
    %v1152 = vsub.f32 %v1031, %v1127
    %v1153 = vsub.f32 %v1036, %v1128
    %v1154 = vsub.f32 %v1039, %v1129
    %v1155 = vsub.f32 %v1044, %v1130
    %v1156 = vsub.f32 %v1047, %v1131
    %v1157 = vsub.f32 %v1052, %v1132
    %v1158 = vmul.f32 %v1133, %v1133
    %v1159 = vmul.f32 %v1134, %v1134
    %v1160 = vmul.f32 %v1135, %v1135
    %v1161 = vmul.f32 %v1136, %v1136
    %v1162 = vmul.f32 %v1137, %v1137
    %v1163 = vmul.f32 %v1138, %v1138
    %v1164 = vmul.f32 %v1139, %v1139
    %v1165 = vmul.f32 %v1140, %v1140
    %v1166 = vmul.f32 %v1141, %v1141
    %v1167 = vmul.f32 %v1142, %v1142
    %v1168 = vmul.f32 %v1143, %v1143
    %v1169 = vmul.f32 %v1144, %v1144
    %v1170 = vmul.f32 %v1145, %v1145
    %v1171 = vmul.f32 %v1146, %v1146
    %v1172 = vmul.f32 %v1147, %v1147
    %v1173 = vmul.f32 %v1148, %v1148
    %v1174 = vmul.f32 %v1149, %v1149
    %v1175 = vmul.f32 %v1150, %v1150
    %v1176 = vmul.f32 %v1151, %v1151
    %v1177 = vmul.f32 %v1152, %v1152
    %v1178 = vmul.f32 %v1153, %v1153
    %v1179 = vmul.f32 %v1154, %v1154
    %v1180 = vmul.f32 %v1155, %v1155
    %v1181 = vmul.f32 %v1156, %v1156
    %v1182 = vmul.f32 %v1157, %v1157
    %1183 = vadd.xlane.f32.xlu0 %v1158
    %v1184 = vpop.xlane.xlu0 %1183
    %1185 = vadd.xlane.f32.xlu0 %v1159
    %v1186 = vpop.xlane.xlu0 %1185
    %1187 = vadd.xlane.f32.xlu0 %v1160
    %v1188 = vpop.xlane.xlu0 %1187
    %1189 = vadd.xlane.f32.xlu0 %v1161
    %v1190 = vpop.xlane.xlu0 %1189
    %1191 = vadd.xlane.f32.xlu0 %v1162
    %v1192 = vpop.xlane.xlu0 %1191
    %1193 = vadd.xlane.f32.xlu0 %v1163
    %v1194 = vpop.xlane.xlu0 %1193
    %1195 = vadd.xlane.f32.xlu0 %v1164
    %v1196 = vpop.xlane.xlu0 %1195
    %1197 = vadd.xlane.f32.xlu0 %v1165
    %v1198 = vpop.xlane.xlu0 %1197
    %1199 = vadd.xlane.f32.xlu0 %v1166
    %v1200 = vpop.xlane.xlu0 %1199
    %1201 = vadd.xlane.f32.xlu0 %v1167
    %v1202 = vpop.xlane.xlu0 %1201
    %1203 = vadd.xlane.f32.xlu0 %v1168
    %v1204 = vpop.xlane.xlu0 %1203
    %1205 = vadd.xlane.f32.xlu0 %v1169
    %v1206 = vpop.xlane.xlu0 %1205
    %1207 = vadd.xlane.f32.xlu0 %v1170
    %v1208 = vpop.xlane.xlu0 %1207
    %1209 = vadd.xlane.f32.xlu0 %v1171
    %v1210 = vpop.xlane.xlu0 %1209
    %1211 = vadd.xlane.f32.xlu0 %v1172
    %v1212 = vpop.xlane.xlu0 %1211
    %1213 = vadd.xlane.f32.xlu0 %v1173
    %v1214 = vpop.xlane.xlu0 %1213
    %1215 = vadd.xlane.f32.xlu0 %v1174
    %v1216 = vpop.xlane.xlu0 %1215
    %1217 = vadd.xlane.f32.xlu0 %v1175
    %v1218 = vpop.xlane.xlu0 %1217
    %1219 = vadd.xlane.f32.xlu0 %v1176
    %v1220 = vpop.xlane.xlu0 %1219
    %1221 = vadd.xlane.f32.xlu0 %v1177
    %v1222 = vpop.xlane.xlu0 %1221
    %1223 = vadd.xlane.f32.xlu0 %v1178
    %v1224 = vpop.xlane.xlu0 %1223
    %1225 = vadd.xlane.f32.xlu0 %v1179
    %v1226 = vpop.xlane.xlu0 %1225
    %1227 = vadd.xlane.f32.xlu0 %v1180
    %v1228 = vpop.xlane.xlu0 %1227
    %1229 = vadd.xlane.f32.xlu0 %v1181
    %v1230 = vpop.xlane.xlu0 %1229
    %1231 = vadd.xlane.f32.xlu0 %v1182
    %v1232 = vpop.xlane.xlu0 %1231
    %v1233 = vmul.f32 %v1184, %v1107
    %v1234 = vmul.f32 %v1186, %v1107
    %v1235 = vmul.f32 %v1188, %v1107
    %v1236 = vmul.f32 %v1190, %v1107
    %v1237 = vmul.f32 %v1192, %v1107
    %v1238 = vmul.f32 %v1194, %v1107
    %v1239 = vmul.f32 %v1196, %v1107
    %v1240 = vmul.f32 %v1198, %v1107
    %v1241 = vmul.f32 %v1200, %v1107
    %v1242 = vmul.f32 %v1202, %v1107
    %v1243 = vmul.f32 %v1204, %v1107
    %v1244 = vmul.f32 %v1206, %v1107
    %v1245 = vmul.f32 %v1208, %v1107
    %v1246 = vmul.f32 %v1210, %v1107
    %v1247 = vmul.f32 %v1212, %v1107
    %v1248 = vmul.f32 %v1214, %v1107
    %v1249 = vmul.f32 %v1216, %v1107
    %v1250 = vmul.f32 %v1218, %v1107
    %v1251 = vmul.f32 %v1220, %v1107
    %v1252 = vmul.f32 %v1222, %v1107
    %v1253 = vmul.f32 %v1224, %v1107
    %v1254 = vmul.f32 %v1226, %v1107
    %v1255 = vmul.f32 %v1228, %v1107
    %v1256 = vmul.f32 %v1230, %v1107
    %v1257 = vmul.f32 %v1232, %v1107
    %v1258 = vadd.f32 %v1233, 1e-05
    %v1259 = vadd.f32 %v1234, 1e-05
    %v1260 = vadd.f32 %v1235, 1e-05
    %v1261 = vadd.f32 %v1236, 1e-05
    %v1262 = vadd.f32 %v1237, 1e-05
    %v1263 = vadd.f32 %v1238, 1e-05
    %v1264 = vadd.f32 %v1239, 1e-05
    %v1265 = vadd.f32 %v1240, 1e-05
    %v1266 = vadd.f32 %v1241, 1e-05
    %v1267 = vadd.f32 %v1242, 1e-05
    %v1268 = vadd.f32 %v1243, 1e-05
    %v1269 = vadd.f32 %v1244, 1e-05
    %v1270 = vadd.f32 %v1245, 1e-05
    %v1271 = vadd.f32 %v1246, 1e-05
    %v1272 = vadd.f32 %v1247, 1e-05
    %v1273 = vadd.f32 %v1248, 1e-05
    %v1274 = vadd.f32 %v1249, 1e-05
    %v1275 = vadd.f32 %v1250, 1e-05
    %v1276 = vadd.f32 %v1251, 1e-05
    %v1277 = vadd.f32 %v1252, 1e-05
    %v1278 = vadd.f32 %v1253, 1e-05
    %v1279 = vadd.f32 %v1254, 1e-05
    %v1280 = vadd.f32 %v1255, 1e-05
    %v1281 = vadd.f32 %v1256, 1e-05
    %v1282 = vadd.f32 %v1257, 1e-05
    %v1283 = vrsqrt.pop %v1258
    %v1284 = vrsqrt.pop %v1259
    %v1285 = vrsqrt.pop %v1260
    %v1286 = vrsqrt.pop %v1261
    %v1287 = vrsqrt.pop %v1262
    %v1288 = vrsqrt.pop %v1263
    %v1289 = vrsqrt.pop %v1264
    %v1290 = vrsqrt.pop %v1265
    %v1291 = vrsqrt.pop %v1266
    %v1292 = vrsqrt.pop %v1267
    %v1293 = vrsqrt.pop %v1268
    %v1294 = vrsqrt.pop %v1269
    %v1295 = vrsqrt.pop %v1270
    %v1296 = vrsqrt.pop %v1271
    %v1297 = vrsqrt.pop %v1272
    %v1298 = vrsqrt.pop %v1273
    %v1299 = vrsqrt.pop %v1274
    %v1300 = vrsqrt.pop %v1275
    %v1301 = vrsqrt.pop %v1276
    %v1302 = vrsqrt.pop %v1277
    %v1303 = vrsqrt.pop %v1278
    %v1304 = vrsqrt.pop %v1279
    %v1305 = vrsqrt.pop %v1280
    %v1306 = vrsqrt.pop %v1281
    %v1307 = vrsqrt.pop %v1282
    %v1308 = vmul.f32 %v1133, %v1283
    %v1309 = vmul.f32 %v1134, %v1284
    %v1310 = vmul.f32 %v1135, %v1285
    %v1311 = vmul.f32 %v1136, %v1286
    %v1312 = vmul.f32 %v1137, %v1287
    %v1313 = vmul.f32 %v1138, %v1288
    %v1314 = vmul.f32 %v1139, %v1289
    %v1315 = vmul.f32 %v1140, %v1290
    %v1316 = vmul.f32 %v1141, %v1291
    %v1317 = vmul.f32 %v1142, %v1292
    %v1318 = vmul.f32 %v1143, %v1293
    %v1319 = vmul.f32 %v1144, %v1294
    %v1320 = vmul.f32 %v1145, %v1295
    %v1321 = vmul.f32 %v1146, %v1296
    %v1322 = vmul.f32 %v1147, %v1297
    %v1323 = vmul.f32 %v1148, %v1298
    %v1324 = vmul.f32 %v1149, %v1299
    %v1325 = vmul.f32 %v1150, %v1300
    %v1326 = vmul.f32 %v1151, %v1301
    %v1327 = vmul.f32 %v1152, %v1302
    %v1328 = vmul.f32 %v1153, %v1303
    %v1329 = vmul.f32 %v1154, %v1304
    %v1330 = vmul.f32 %v1155, %v1305
    %v1331 = vmul.f32 %v1156, %v1306
    %v1332 = vmul.f32 %v1157, %v1307
    %v1333 = vld [vmem:[%s5] sm:$0x1]
    %v1335 = vlaneseq
    %v1336 = vshrl.u32 %v1335, 7
    %v1337 = vsub.s32 0, %v1336
    %v1338 = vrot.slane %v1333, %v1337
    %v1340 = vmul.f32 %v1308, %v1338
    %v1341 = vmul.f32 %v1309, %v1338
    %v1342 = vmul.f32 %v1310, %v1338
    %v1343 = vmul.f32 %v1311, %v1338
    %v1344 = vmul.f32 %v1312, %v1338
    %v1345 = vmul.f32 %v1313, %v1338
    %v1346 = vmul.f32 %v1314, %v1338
    %v1347 = vmul.f32 %v1315, %v1338
    %v1348 = vmul.f32 %v1316, %v1338
    %v1349 = vmul.f32 %v1317, %v1338
    %v1350 = vmul.f32 %v1318, %v1338
    %v1351 = vmul.f32 %v1319, %v1338
    %v1352 = vmul.f32 %v1320, %v1338
    %v1353 = vmul.f32 %v1321, %v1338
    %v1354 = vmul.f32 %v1322, %v1338
    %v1355 = vmul.f32 %v1323, %v1338
    %v1356 = vmul.f32 %v1324, %v1338
    %v1357 = vmul.f32 %v1325, %v1338
    %v1358 = vmul.f32 %v1326, %v1338
    %v1359 = vmul.f32 %v1327, %v1338
    %v1360 = vmul.f32 %v1328, %v1338
    %v1361 = vmul.f32 %v1329, %v1338
    %v1362 = vmul.f32 %v1330, %v1338
    %v1363 = vmul.f32 %v1331, %v1338
    %v1364 = vmul.f32 %v1332, %v1338
    %v1365 = vld [vmem:[%s6] sm:$0x1]
    %v1367 = vlaneseq
    %v1368 = vshrl.u32 %v1367, 7
    %v1369 = vsub.s32 0, %v1368
    %v1370 = vrot.slane %v1365, %v1369
    %v1372 = vadd.f32 %v1340, %v1370
    %v1373 = vadd.f32 %v1341, %v1370
    %v1374 = vadd.f32 %v1342, %v1370
    %v1375 = vadd.f32 %v1343, %v1370
    %v1376 = vadd.f32 %v1344, %v1370
    %v1377 = vadd.f32 %v1345, %v1370
    %v1378 = vadd.f32 %v1346, %v1370
    %v1379 = vadd.f32 %v1347, %v1370
    %v1380 = vadd.f32 %v1348, %v1370
    %v1381 = vadd.f32 %v1349, %v1370
    %v1382 = vadd.f32 %v1350, %v1370
    %v1383 = vadd.f32 %v1351, %v1370
    %v1384 = vadd.f32 %v1352, %v1370
    %v1385 = vadd.f32 %v1353, %v1370
    %v1386 = vadd.f32 %v1354, %v1370
    %v1387 = vadd.f32 %v1355, %v1370
    %v1388 = vadd.f32 %v1356, %v1370
    %v1389 = vadd.f32 %v1357, %v1370
    %v1390 = vadd.f32 %v1358, %v1370
    %v1391 = vadd.f32 %v1359, %v1370
    %v1392 = vadd.f32 %v1360, %v1370
    %v1393 = vadd.f32 %v1361, %v1370
    %v1394 = vadd.f32 %v1362, %v1370
    %v1395 = vadd.f32 %v1363, %v1370
    %v1396 = vadd.f32 %v1364, %v1370
    %1397 = vst [vmem:[#allocation8] sm:$0xff] %v1372
    %1398 = vst [vmem:[#allocation8 + $0x8] sm:$0xff] %v1373
    %1399 = vst [vmem:[#allocation8 + $0x10] sm:$0xff] %v1374
    %1400 = vst [vmem:[#allocation8 + $0x18] sm:$0xff] %v1375
    %1401 = vst [vmem:[#allocation8 + $0x20] sm:$0xff] %v1376
    %1402 = vst [vmem:[#allocation8 + $0x28] sm:$0xff] %v1377
    %1403 = vst [vmem:[#allocation8 + $0x30] sm:$0xff] %v1378
    %1404 = vst [vmem:[#allocation8 + $0x38] sm:$0xff] %v1379
    %1405 = vst [vmem:[#allocation8 + $0x40] sm:$0xff] %v1380
    %1406 = vst [vmem:[#allocation8 + $0x48] sm:$0xff] %v1381
    %1407 = vst [vmem:[#allocation8 + $0x50] sm:$0xff] %v1382
    %1408 = vst [vmem:[#allocation8 + $0x58] sm:$0xff] %v1383
    %1409 = vst [vmem:[#allocation8 + $0x60] sm:$0xff] %v1384
    %1410 = vst [vmem:[#allocation8 + $0x68] sm:$0xff] %v1385
    %1411 = vst [vmem:[#allocation8 + $0x70] sm:$0xff] %v1386
    %1412 = vst [vmem:[#allocation8 + $0x78] sm:$0xff] %v1387
    %1413 = vst [vmem:[#allocation8 + $0x80] sm:$0xff] %v1388
    %1414 = vst [vmem:[#allocation8 + $0x88] sm:$0xff] %v1389
    %1415 = vst [vmem:[#allocation8 + $0x90] sm:$0xff] %v1390
    %1416 = vst [vmem:[#allocation8 + $0x98] sm:$0xff] %v1391
    %1417 = vst [vmem:[#allocation8 + $0xa0] sm:$0xff] %v1392
    %1418 = vst [vmem:[#allocation8 + $0xa8] sm:$0xff] %v1393
    %1419 = vst [vmem:[#allocation8 + $0xb0] sm:$0xff] %v1394
    %1420 = vst [vmem:[#allocation8 + $0xb8] sm:$0xff] %v1395
    %1421 = vst [vmem:[#allocation8 + $0xc0] sm:$0xff] %v1396
    // Predicated region
    $region42: #{_mlp_proj_call.1} parent=1 // pred_check
      _
    $region43: #{_mlp_proj_call.1} parent=1 // pred_check_branch
      %1423 = sbr.rel (0) target = $region45
    $region44: #{_mlp_proj_call.1} parent=1 // pred_region
      %s1425 = ssub.s32 3200, 3200
      %1426 = vsyncadd [#allocation4], %s1425
      %s1427 = sshll.u32 [#allocation8], 4
      %s1428 = int_to_ptr.vmem [resolvable:$true] %s1427
      %1433 = dma.vmem_to_hbm [thread:$0]  %s1428, 3200, %s7, [#allocation4], 128, 128, 8
    $region45: #{_mlp_proj_call.1} parent=1 // pred_fallthru
      _
    // Predicated region
    $region46: #{_mlp_proj_call.1} parent=1 // pred_check
      _
    $region47: #{_mlp_proj_call.1} parent=1 // pred_check_branch
      %1435 = sbr.rel (0) target = $region49
    $region48: #{_mlp_proj_call.1} parent=1 // pred_region
      %1436 = dma.done [#allocation4], 3200
    $region49: #{_mlp_proj_call.1} parent=1 // pred_fallthru
      _
    %1437 = vsyncpa [#allocation3], 1
    %1438 = vsyncpa [#allocation6], 1
    %1439 = vsyncpa [#allocation4], 1

</llo_original>
